<compile_context>
chip_gen: v5e
topology: v5e:2x2
jax: 0.10.0
libtpu: 0.0.40
codegen_flags: <defaults>
</compile_context>

<pallas_src>
import math

import jax
import jax.numpy as jnp
import numpy as np
from jax.experimental import pallas as pl
from jax.experimental.pallas import tpu as pltpu

# ---- model hyper-parameters (small, consistent with a tiny BERT) ----------
B, S, D, H, DFF, VOCAB, N_LAYERS = 2, 8, 32, 4, 64, 64, 2
HD = D // H
BS = B * S
PAD_IDX = 0
LN_EPS = 1e-5
NEG = -1e9


# ---------------------------------------------------------------------------
# Fused Pallas kernel: embedding + mask + all encoder layers + generator
# ---------------------------------------------------------------------------
def bert_fused_kernel(src_col_ref, src_row_ref, cross_bias_ref,
                      tok_ref, pos_ref,
                      wqkv_ref, bqkv_ref, wo_ref, bo_ref,
                      ln1_g_ref, ln1_b_ref, w1_ref, b1_ref, w2_ref, b2_ref,
                      ln2_g_ref, ln2_b_ref, gen_w_ref, gen_b_ref, out_ref):
    ids_col = src_col_ref[...]          # (BS, 1) int32 token ids
    ids_row = src_row_ref[...]          # (1, BS) int32 token ids
    cross_bias = cross_bias_ref[...]    # (BS, BS) f32: 0 same batch, -1e9 cross

    # ---- embedding: one-hot matmul gather (tok_ref pre-scaled by sqrt(D)) --
    vocab_iota = jax.lax.broadcasted_iota(jnp.int32, (BS, VOCAB), 1)
    onehot = (vocab_iota == ids_col).astype(jnp.float32)          # (BS, VOCAB)
    x = (jnp.dot(onehot, tok_ref[...], preferred_element_type=jnp.float32)
         + pos_ref[...])                                           # (BS, D)

    # ---- additive attention bias (matches reference -1e9 fill semantics) ---
    same_batch = cross_bias == 0.0
    keep = (ids_col != PAD_IDX) & (ids_row != PAD_IDX) & same_batch
    bias = jnp.where(keep, 0.0, NEG) + cross_bias                  # (BS, BS)

    scale = 1.0 / math.sqrt(HD)

    for l in range(N_LAYERS):           # static unroll over layers
        # fused Q/K/V projection: one (16,32)x(32,96) matmul
        qkv = (jnp.dot(x, wqkv_ref[l], preferred_element_type=jnp.float32)
               + bqkv_ref[l])                                      # (BS, 3D)
        wo = wo_ref[l]                                             # (D, D)

        # multi-head attention; per-head context folded into output proj.
        attn = jnp.zeros((BS, D), jnp.float32)
        for h in range(H):              # static unroll over heads
            qs = qkv[:, h * HD:(h + 1) * HD]
            ks = qkv[:, D + h * HD:D + (h + 1) * HD]
            vs = qkv[:, 2 * D + h * HD:2 * D + (h + 1) * HD]
            s = jax.lax.dot_general(
                qs, ks, dimension_numbers=(((1,), (1,)), ((), ())),
                preferred_element_type=jnp.float32) * scale + bias
            s = s - jnp.max(s, axis=-1, keepdims=True)
            p = jnp.exp(s)
            p = p * pl.reciprocal(jnp.sum(p, axis=-1, keepdims=True),
                                  approx=True)
            ctx = jnp.dot(p, vs, preferred_element_type=jnp.float32)   # (BS,HD)
            attn = attn + jnp.dot(ctx, wo[h * HD:(h + 1) * HD, :],
                                  preferred_element_type=jnp.float32)  # (BS,D)
        attn = attn + bo_ref[l]

        # residual + layernorm 1
        y = x + attn
        mu = jnp.mean(y, axis=-1, keepdims=True)
        var = jnp.mean((y - mu) ** 2, axis=-1, keepdims=True)
        y = (y - mu) * jax.lax.rsqrt(var + LN_EPS) * ln1_g_ref[l] + ln1_b_ref[l]

        # position-wise feed-forward (ReLU)
        h1 = jnp.maximum(
            jnp.dot(y, w1_ref[l], preferred_element_type=jnp.float32)
            + b1_ref[l], 0.0)
        ff = jnp.dot(h1, w2_ref[l], preferred_element_type=jnp.float32) + b2_ref[l]

        # residual + layernorm 2
        z = y + ff
        mu2 = jnp.mean(z, axis=-1, keepdims=True)
        var2 = jnp.mean((z - mu2) ** 2, axis=-1, keepdims=True)
        x = (z - mu2) * jax.lax.rsqrt(var2 + LN_EPS) * ln2_g_ref[l] + ln2_b_ref[l]

    # generator: linear + log_softmax over vocab
    logits = (jnp.dot(x, gen_w_ref[...], preferred_element_type=jnp.float32)
              + gen_b_ref[...])
    m = jnp.max(logits, axis=-1, keepdims=True)
    lse = jnp.log(jnp.sum(jnp.exp(logits - m), axis=-1, keepdims=True)) + m
    out_ref[...] = logits - lse


# ---------------------------------------------------------------------------
# One-time parameter packing (executed OUTSIDE jit, once)
# ---------------------------------------------------------------------------
def pack_params(params):
    layers = params["layers"]

    def stk(name):
        return jnp.stack([p[name] for p in layers], axis=0)

    batch_ids = np.repeat(np.arange(B, dtype=np.int32), S)
    same = (batch_ids[:, None] == batch_ids[None, :])
    cross_bias = jnp.asarray(np.where(same, 0.0, NEG), dtype=jnp.float32)

    return {
        "cross_bias": cross_bias,                                  # (BS, BS)
        "tok_emb_scaled": params["tok_emb"] * math.sqrt(D),        # (VOCAB, D)
        "pos_tiled": jnp.tile(params["pos_emb"], (B, 1)),          # (BS, D)
        "wqkv": jnp.stack(
            [jnp.concatenate([p["wq"], p["wk"], p["wv"]], axis=1)
             for p in layers], axis=0),                            # (L, D, 3D)
        "bqkv": jnp.stack(
            [jnp.concatenate([p["bq"], p["bk"], p["bv"]], axis=1)
             for p in layers], axis=0),                            # (L, 1, 3D)
        "wo": stk("wo"), "bo": stk("bo"),
        "ln1_g": stk("ln1_g"), "ln1_b": stk("ln1_b"),
        "w1": stk("w1"), "b1": stk("b1"),
        "w2": stk("w2"), "b2": stk("b2"),
        "ln2_g": stk("ln2_g"), "ln2_b": stk("ln2_b"),
        "gen_w": params["gen_w"], "gen_b": params["gen_b"],
    }


# ---------------------------------------------------------------------------
# JAX glue: just two reshapes + one pallas_call
# ---------------------------------------------------------------------------
def _bert_forward(src, pk):
    src_col = src.reshape(BS, 1).astype(jnp.int32)
    src_row = src.reshape(1, BS).astype(jnp.int32)
    args = (src_col, src_row, pk["cross_bias"],
            pk["tok_emb_scaled"], pk["pos_tiled"],
            pk["wqkv"], pk["bqkv"], pk["wo"], pk["bo"],
            pk["ln1_g"], pk["ln1_b"], pk["w1"], pk["b1"],
            pk["w2"], pk["b2"], pk["ln2_g"], pk["ln2_b"],
            pk["gen_w"], pk["gen_b"])
    vmem_spec = pl.BlockSpec(memory_space=pltpu.MemorySpace.VMEM)
    out = pl.pallas_call(
        bert_fused_kernel,
        out_shape=jax.ShapeDtypeStruct((BS, VOCAB), jnp.float32),
        in_specs=[vmem_spec] * len(args),
        out_specs=vmem_spec,
        compiler_params=pltpu.CompilerParams(
            vmem_limit_bytes=32 * 1024 * 1024),
    )(*args)
    return out.reshape(B, S, VOCAB)


bert_forward = jax.jit(_bert_forward)


# ---------------------------------------------------------------------------
# pure-JAX reference (same math as the PyTorch module) for correctness check
# ---------------------------------------------------------------------------
def embed(src, tok_table, pos_table):
    return tok_table[src] * math.sqrt(D) + pos_table[None, :S, :]


def make_src_mask(src):
    q_mask = (src != PAD_IDX)[:, None, :, None]
    k_mask = (src != PAD_IDX)[:, None, None, :]
    return jnp.broadcast_to(q_mask & k_mask, (B, 1, S, S))


def _layernorm(x, g, b):
    mu = jnp.mean(x, axis=-1, keepdims=True)
    var = jnp.mean((x - mu) ** 2, axis=-1, keepdims=True)
    return (x - mu) * jax.lax.rsqrt(var + LN_EPS) * g + b


def bert_forward_ref(src, params):
    mask = make_src_mask(src).astype(jnp.float32)            # (B,1,S,S)
    x = embed(src, params["tok_emb"], params["pos_emb"])
    for p in params["layers"]:
        q = x @ p["wq"] + p["bq"]
        k = x @ p["wk"] + p["bk"]
        v = x @ p["wv"] + p["bv"]
        q = q.reshape(B, S, H, HD).transpose(0, 2, 1, 3)
        k = k.reshape(B, S, H, HD).transpose(0, 2, 1, 3)
        v = v.reshape(B, S, H, HD).transpose(0, 2, 1, 3)
        scores = jnp.einsum("bhqd,bhkd->bhqk", q, k) / math.sqrt(HD)
        scores = jnp.where(mask > 0.0, scores, NEG)
        attn = jax.nn.softmax(scores, axis=-1)
        ctx = jnp.einsum("bhqk,bhkd->bhqd", attn, v)
        ctx = ctx.transpose(0, 2, 1, 3).reshape(B, S, D)
        x = _layernorm(x + ctx @ p["wo"] + p["bo"], p["ln1_g"], p["ln1_b"])
        ff = jnp.maximum(x @ p["w1"] + p["b1"], 0.0) @ p["w2"] + p["b2"]
        x = _layernorm(x + ff, p["ln2_g"], p["ln2_b"])
    logits = x @ params["gen_w"] + params["gen_b"]
    return jax.nn.log_softmax(logits, axis=-1)


# ---------------------------------------------------------------------------
# deterministic parameter init
# ---------------------------------------------------------------------------
def init_params(key):
    def nrm(k, shape, scale=0.02):
        return scale * jax.random.normal(k, shape, jnp.float32)

    keys = iter(jax.random.split(key, 64))
    params = {
        "tok_emb": nrm(next(keys), (VOCAB, D)),
        "pos_emb": nrm(next(keys), (S, D)),
        "gen_w": nrm(next(keys), (D, VOCAB)),
        "gen_b": jnp.zeros((1, VOCAB), jnp.float32),
        "layers": [],
    }
    for _ in range(N_LAYERS):
        params["layers"].append({
            "wq": nrm(next(keys), (D, D)), "bq": jnp.zeros((1, D), jnp.float32),
            "wk": nrm(next(keys), (D, D)), "bk": jnp.zeros((1, D), jnp.float32),
            "wv": nrm(next(keys), (D, D)), "bv": jnp.zeros((1, D), jnp.float32),
            "wo": nrm(next(keys), (D, D)), "bo": jnp.zeros((1, D), jnp.float32),
            "ln1_g": jnp.ones((1, D), jnp.float32),
            "ln1_b": jnp.zeros((1, D), jnp.float32),
            "w1": nrm(next(keys), (D, DFF)), "b1": jnp.zeros((1, DFF), jnp.float32),
            "w2": nrm(next(keys), (DFF, D)), "b2": jnp.zeros((1, D), jnp.float32),
            "ln2_g": jnp.ones((1, D), jnp.float32),
            "ln2_b": jnp.zeros((1, D), jnp.float32),
        })
    return params


if __name__ == "__main__":
    key = jax.random.PRNGKey(0)
    pkey, skey = jax.random.split(key)
    params = init_params(pkey)
    packed = pack_params(params)          # one-time packing, outside jit

    # token ids; force a few pad tokens so the mask path is exercised
    src = jax.random.randint(skey, (B, S), 1, VOCAB, dtype=jnp.int32)
    src = src.at[0, -1].set(PAD_IDX)
    src = src.at[1, -3:].set(PAD_IDX)

    out = jax.block_until_ready(bert_forward(src, packed))
    assert out.shape == (B, S, VOCAB)

    ref = jax.block_until_ready(bert_forward_ref(src, params))
    assert jnp.allclose(out, ref, rtol=1e-3, atol=1e-3), (
        float(jnp.max(jnp.abs(out - ref))))

    print("KERNEL_OK")
</pallas_src>

<mosaic_0001>
module attributes {stable_mosaic.version = 11 : i64} {
  func.func @bert_fused_kernel(%arg0: memref<16x1xi32, #tpu.memory_space<vmem>>, %arg1: memref<1x16xi32, #tpu.memory_space<vmem>>, %arg2: memref<16x16xf32, #tpu.memory_space<vmem>>, %arg3: memref<64x32xf32, #tpu.memory_space<vmem>>, %arg4: memref<16x32xf32, #tpu.memory_space<vmem>>, %arg5: memref<2x32x96xf32, #tpu.memory_space<vmem>>, %arg6: memref<2x1x96xf32, #tpu.memory_space<vmem>>, %arg7: memref<2x32x32xf32, #tpu.memory_space<vmem>>, %arg8: memref<2x1x32xf32, #tpu.memory_space<vmem>>, %arg9: memref<2x1x32xf32, #tpu.memory_space<vmem>>, %arg10: memref<2x1x32xf32, #tpu.memory_space<vmem>>, %arg11: memref<2x32x64xf32, #tpu.memory_space<vmem>>, %arg12: memref<2x1x64xf32, #tpu.memory_space<vmem>>, %arg13: memref<2x64x32xf32, #tpu.memory_space<vmem>>, %arg14: memref<2x1x32xf32, #tpu.memory_space<vmem>>, %arg15: memref<2x1x32xf32, #tpu.memory_space<vmem>>, %arg16: memref<2x1x32xf32, #tpu.memory_space<vmem>>, %arg17: memref<32x64xf32, #tpu.memory_space<vmem>>, %arg18: memref<1x64xf32, #tpu.memory_space<vmem>>, %arg19: memref<16x64xf32, #tpu.memory_space<vmem>>) attributes {dimension_semantics = [], scalar_prefetch = 0 : i64, scratch_operands = 0 : i64, tpu.core_type = #tpu.core_type<tc>} {
    %c0 = arith.constant 0 : index
    %c0_0 = arith.constant 0 : index
    %0 = vector.load %arg0[%c0, %c0_0] : memref<16x1xi32, #tpu.memory_space<vmem>>, vector<16x1xi32>
    %c0_1 = arith.constant 0 : index
    %c0_2 = arith.constant 0 : index
    %1 = vector.load %arg1[%c0_1, %c0_2] : memref<1x16xi32, #tpu.memory_space<vmem>>, vector<1x16xi32>
    %c0_3 = arith.constant 0 : index
    %c0_4 = arith.constant 0 : index
    %2 = vector.load %arg2[%c0_3, %c0_4] : memref<16x16xf32, #tpu.memory_space<vmem>>, vector<16x16xf32>
    %3 = tpu.iota {dimensions = array<i32: 1>} : vector<16x64xi32>
    %4 = vector.broadcast %0 : vector<16x1xi32> to vector<16x64xi32>
    %5 = arith.cmpi eq, %3, %4 : vector<16x64xi32>
    %6 = arith.extui %5 : vector<16x64xi1> to vector<16x64xi32>
    %7 = arith.sitofp %6 : vector<16x64xi32> to vector<16x64xf32>
    %c0_5 = arith.constant 0 : index
    %c0_6 = arith.constant 0 : index
    %8 = vector.load %arg3[%c0_5, %c0_6] : memref<64x32xf32, #tpu.memory_space<vmem>>, vector<64x32xf32>
    %cst = arith.constant dense<0.000000e+00> : vector<16x32xf32>
    %9 = tpu.matmul %7, %8, %cst {dimension_numbers = #tpu.dot_dimension_numbers<[1], [0], [0], [1], [0, 0, 1, 1], [], []>} : vector<16x64xf32>, vector<64x32xf32>, vector<16x32xf32> -> vector<16x32xf32>
    %c0_7 = arith.constant 0 : index
    %c0_8 = arith.constant 0 : index
    %10 = vector.load %arg4[%c0_7, %c0_8] : memref<16x32xf32, #tpu.memory_space<vmem>>, vector<16x32xf32>
    %11 = arith.addf %9, %10 : vector<16x32xf32>
    %cst_9 = arith.constant 0.000000e+00 : f32
    %12 = vector.broadcast %cst_9 : f32 to vector<16x16xf32>
    %13 = arith.cmpf oeq, %2, %12 : vector<16x16xf32>
    %c0_i32 = arith.constant 0 : i32
    %14 = vector.broadcast %c0_i32 : i32 to vector<16x1xi32>
    %15 = arith.cmpi ne, %0, %14 : vector<16x1xi32>
    %c0_i32_10 = arith.constant 0 : i32
    %16 = vector.broadcast %c0_i32_10 : i32 to vector<1x16xi32>
    %17 = arith.cmpi ne, %1, %16 : vector<1x16xi32>
    %18 = vector.broadcast %15 : vector<16x1xi1> to vector<16x16xi1>
    %19 = vector.broadcast %17 : vector<1x16xi1> to vector<16x16xi1>
    %20 = arith.andi %18, %19 : vector<16x16xi1>
    %21 = arith.andi %20, %13 : vector<16x16xi1>
    %cst_11 = arith.constant 0.000000e+00 : f32
    %cst_12 = arith.constant -1.000000e+09 : f32
    %22 = vector.broadcast %cst_11 : f32 to vector<16x16xf32>
    %23 = vector.broadcast %cst_12 : f32 to vector<16x16xf32>
    %24 = arith.select %21, %22, %23 : vector<16x16xi1>, vector<16x16xf32>
    %25 = arith.addf %24, %2 : vector<16x16xf32>
    %c0_13 = arith.constant 0 : index
    %c0_14 = arith.constant 0 : index
    %c0_15 = arith.constant 0 : index
    %26 = vector.load %arg5[%c0_13, %c0_14, %c0_15] : memref<2x32x96xf32, #tpu.memory_space<vmem>>, vector<1x32x96xf32>
    %27 = vector.shape_cast %26 : vector<1x32x96xf32> to vector<32x96xf32>
    %cst_16 = arith.constant dense<0.000000e+00> : vector<16x96xf32>
    %28 = tpu.matmul %11, %27, %cst_16 {dimension_numbers = #tpu.dot_dimension_numbers<[1], [0], [0], [1], [0, 0, 1, 1], [], []>} : vector<16x32xf32>, vector<32x96xf32>, vector<16x96xf32> -> vector<16x96xf32>
    %c0_17 = arith.constant 0 : index
    %c0_18 = arith.constant 0 : index
    %c0_19 = arith.constant 0 : index
    %29 = vector.load %arg6[%c0_17, %c0_18, %c0_19] : memref<2x1x96xf32, #tpu.memory_space<vmem>>, vector<1x1x96xf32>
    %30 = vector.shape_cast %29 : vector<1x1x96xf32> to vector<1x96xf32>
    %31 = vector.broadcast %30 : vector<1x96xf32> to vector<16x96xf32>
    %32 = arith.addf %28, %31 : vector<16x96xf32>
    %c0_20 = arith.constant 0 : index
    %c0_21 = arith.constant 0 : index
    %c0_22 = arith.constant 0 : index
    %33 = vector.load %arg7[%c0_20, %c0_21, %c0_22] : memref<2x32x32xf32, #tpu.memory_space<vmem>>, vector<1x32x32xf32>
    %34 = vector.shape_cast %33 : vector<1x32x32xf32> to vector<32x32xf32>
    %cst_23 = arith.constant 0.000000e+00 : f32
    %35 = vector.broadcast %cst_23 : f32 to vector<16x32xf32>
    %36 = vector.extract_strided_slice %32 {offsets = [0, 0], sizes = [16, 8], strides = [1, 1]} : vector<16x96xf32> to vector<16x8xf32>
    %37 = vector.extract_strided_slice %32 {offsets = [0, 32], sizes = [16, 8], strides = [1, 1]} : vector<16x96xf32> to vector<16x8xf32>
    %38 = vector.extract_strided_slice %32 {offsets = [0, 64], sizes = [16, 8], strides = [1, 1]} : vector<16x96xf32> to vector<16x8xf32>
    %cst_24 = arith.constant dense<0.000000e+00> : vector<16x16xf32>
    %39 = tpu.matmul %36, %37, %cst_24 {dimension_numbers = #tpu.dot_dimension_numbers<[1], [1], [0], [0], [0, 0, 1, 0], [], []>} : vector<16x8xf32>, vector<16x8xf32>, vector<16x16xf32> -> vector<16x16xf32>
    %cst_25 = arith.constant 0.353553385 : f32
    %40 = vector.broadcast %cst_25 : f32 to vector<16x16xf32>
    %41 = arith.mulf %39, %40 : vector<16x16xf32>
    %42 = arith.addf %41, %25 : vector<16x16xf32>
    %cst_26 = arith.constant dense<0xFF800000> : vector<16xf32>
    %43 = vector.multi_reduction <maximumf>, %42, %cst_26 [1] : vector<16x16xf32> to vector<16xf32>
    %44 = vector.shape_cast %43 : vector<16xf32> to vector<16x1xf32>
    %45 = vector.broadcast %44 : vector<16x1xf32> to vector<16x16xf32>
    %46 = arith.subf %42, %45 : vector<16x16xf32>
    %47 = math.exp %46 : vector<16x16xf32>
    %cst_27 = arith.constant dense<0.000000e+00> : vector<16xf32>
    %48 = vector.multi_reduction <add>, %47, %cst_27 [1] : vector<16x16xf32> to vector<16xf32>
    %49 = vector.shape_cast %48 : vector<16xf32> to vector<16x1xf32>
    %50 = tpu.reciprocal %49 {approx = true} : vector<16x1xf32> -> vector<16x1xf32>
    %51 = vector.broadcast %50 : vector<16x1xf32> to vector<16x16xf32>
    %52 = arith.mulf %47, %51 : vector<16x16xf32>
    %cst_28 = arith.constant dense<0.000000e+00> : vector<16x8xf32>
    %53 = tpu.matmul %52, %38, %cst_28 {dimension_numbers = #tpu.dot_dimension_numbers<[1], [0], [0], [1], [0, 0, 1, 1], [], []>} : vector<16x16xf32>, vector<16x8xf32>, vector<16x8xf32> -> vector<16x8xf32>
    %54 = vector.extract_strided_slice %34 {offsets = [0, 0], sizes = [8, 32], strides = [1, 1]} : vector<32x32xf32> to vector<8x32xf32>
    %cst_29 = arith.constant dense<0.000000e+00> : vector<16x32xf32>
    %55 = tpu.matmul %53, %54, %cst_29 {dimension_numbers = #tpu.dot_dimension_numbers<[1], [0], [0], [1], [0, 0, 1, 1], [], []>} : vector<16x8xf32>, vector<8x32xf32>, vector<16x32xf32> -> vector<16x32xf32>
    %56 = arith.addf %35, %55 : vector<16x32xf32>
    %57 = vector.extract_strided_slice %32 {offsets = [0, 8], sizes = [16, 8], strides = [1, 1]} : vector<16x96xf32> to vector<16x8xf32>
    %58 = vector.extract_strided_slice %32 {offsets = [0, 40], sizes = [16, 8], strides = [1, 1]} : vector<16x96xf32> to vector<16x8xf32>
    %59 = vector.extract_strided_slice %32 {offsets = [0, 72], sizes = [16, 8], strides = [1, 1]} : vector<16x96xf32> to vector<16x8xf32>
    %cst_30 = arith.constant dense<0.000000e+00> : vector<16x16xf32>
    %60 = tpu.matmul %57, %58, %cst_30 {dimension_numbers = #tpu.dot_dimension_numbers<[1], [1], [0], [0], [0, 0, 1, 0], [], []>} : vector<16x8xf32>, vector<16x8xf32>, vector<16x16xf32> -> vector<16x16xf32>
    %cst_31 = arith.constant 0.353553385 : f32
    %61 = vector.broadcast %cst_31 : f32 to vector<16x16xf32>
    %62 = arith.mulf %60, %61 : vector<16x16xf32>
    %63 = arith.addf %62, %25 : vector<16x16xf32>
    %cst_32 = arith.constant dense<0xFF800000> : vector<16xf32>
    %64 = vector.multi_reduction <maximumf>, %63, %cst_32 [1] : vector<16x16xf32> to vector<16xf32>
    %65 = vector.shape_cast %64 : vector<16xf32> to vector<16x1xf32>
    %66 = vector.broadcast %65 : vector<16x1xf32> to vector<16x16xf32>
    %67 = arith.subf %63, %66 : vector<16x16xf32>
    %68 = math.exp %67 : vector<16x16xf32>
    %cst_33 = arith.constant dense<0.000000e+00> : vector<16xf32>
    %69 = vector.multi_reduction <add>, %68, %cst_33 [1] : vector<16x16xf32> to vector<16xf32>
    %70 = vector.shape_cast %69 : vector<16xf32> to vector<16x1xf32>
    %71 = tpu.reciprocal %70 {approx = true} : vector<16x1xf32> -> vector<16x1xf32>
    %72 = vector.broadcast %71 : vector<16x1xf32> to vector<16x16xf32>
    %73 = arith.mulf %68, %72 : vector<16x16xf32>
    %cst_34 = arith.constant dense<0.000000e+00> : vector<16x8xf32>
    %74 = tpu.matmul %73, %59, %cst_34 {dimension_numbers = #tpu.dot_dimension_numbers<[1], [0], [0], [1], [0, 0, 1, 1], [], []>} : vector<16x16xf32>, vector<16x8xf32>, vector<16x8xf32> -> vector<16x8xf32>
    %75 = vector.extract_strided_slice %34 {offsets = [8, 0], sizes = [8, 32], strides = [1, 1]} : vector<32x32xf32> to vector<8x32xf32>
    %cst_35 = arith.constant dense<0.000000e+00> : vector<16x32xf32>
    %76 = tpu.matmul %74, %75, %cst_35 {dimension_numbers = #tpu.dot_dimension_numbers<[1], [0], [0], [1], [0, 0, 1, 1], [], []>} : vector<16x8xf32>, vector<8x32xf32>, vector<16x32xf32> -> vector<16x32xf32>
    %77 = arith.addf %56, %76 : vector<16x32xf32>
    %78 = vector.extract_strided_slice %32 {offsets = [0, 16], sizes = [16, 8], strides = [1, 1]} : vector<16x96xf32> to vector<16x8xf32>
    %79 = vector.extract_strided_slice %32 {offsets = [0, 48], sizes = [16, 8], strides = [1, 1]} : vector<16x96xf32> to vector<16x8xf32>
    %80 = vector.extract_strided_slice %32 {offsets = [0, 80], sizes = [16, 8], strides = [1, 1]} : vector<16x96xf32> to vector<16x8xf32>
    %cst_36 = arith.constant dense<0.000000e+00> : vector<16x16xf32>
    %81 = tpu.matmul %78, %79, %cst_36 {dimension_numbers = #tpu.dot_dimension_numbers<[1], [1], [0], [0], [0, 0, 1, 0], [], []>} : vector<16x8xf32>, vector<16x8xf32>, vector<16x16xf32> -> vector<16x16xf32>
    %cst_37 = arith.constant 0.353553385 : f32
    %82 = vector.broadcast %cst_37 : f32 to vector<16x16xf32>
    %83 = arith.mulf %81, %82 : vector<16x16xf32>
    %84 = arith.addf %83, %25 : vector<16x16xf32>
    %cst_38 = arith.constant dense<0xFF800000> : vector<16xf32>
    %85 = vector.multi_reduction <maximumf>, %84, %cst_38 [1] : vector<16x16xf32> to vector<16xf32>
    %86 = vector.shape_cast %85 : vector<16xf32> to vector<16x1xf32>
    %87 = vector.broadcast %86 : vector<16x1xf32> to vector<16x16xf32>
    %88 = arith.subf %84, %87 : vector<16x16xf32>
    %89 = math.exp %88 : vector<16x16xf32>
    %cst_39 = arith.constant dense<0.000000e+00> : vector<16xf32>
    %90 = vector.multi_reduction <add>, %89, %cst_39 [1] : vector<16x16xf32> to vector<16xf32>
    %91 = vector.shape_cast %90 : vector<16xf32> to vector<16x1xf32>
    %92 = tpu.reciprocal %91 {approx = true} : vector<16x1xf32> -> vector<16x1xf32>
    %93 = vector.broadcast %92 : vector<16x1xf32> to vector<16x16xf32>
    %94 = arith.mulf %89, %93 : vector<16x16xf32>
    %cst_40 = arith.constant dense<0.000000e+00> : vector<16x8xf32>
    %95 = tpu.matmul %94, %80, %cst_40 {dimension_numbers = #tpu.dot_dimension_numbers<[1], [0], [0], [1], [0, 0, 1, 1], [], []>} : vector<16x16xf32>, vector<16x8xf32>, vector<16x8xf32> -> vector<16x8xf32>
    %96 = vector.extract_strided_slice %34 {offsets = [16, 0], sizes = [8, 32], strides = [1, 1]} : vector<32x32xf32> to vector<8x32xf32>
    %cst_41 = arith.constant dense<0.000000e+00> : vector<16x32xf32>
    %97 = tpu.matmul %95, %96, %cst_41 {dimension_numbers = #tpu.dot_dimension_numbers<[1], [0], [0], [1], [0, 0, 1, 1], [], []>} : vector<16x8xf32>, vector<8x32xf32>, vector<16x32xf32> -> vector<16x32xf32>
    %98 = arith.addf %77, %97 : vector<16x32xf32>
    %99 = vector.extract_strided_slice %32 {offsets = [0, 24], sizes = [16, 8], strides = [1, 1]} : vector<16x96xf32> to vector<16x8xf32>
    %100 = vector.extract_strided_slice %32 {offsets = [0, 56], sizes = [16, 8], strides = [1, 1]} : vector<16x96xf32> to vector<16x8xf32>
    %101 = vector.extract_strided_slice %32 {offsets = [0, 88], sizes = [16, 8], strides = [1, 1]} : vector<16x96xf32> to vector<16x8xf32>
    %cst_42 = arith.constant dense<0.000000e+00> : vector<16x16xf32>
    %102 = tpu.matmul %99, %100, %cst_42 {dimension_numbers = #tpu.dot_dimension_numbers<[1], [1], [0], [0], [0, 0, 1, 0], [], []>} : vector<16x8xf32>, vector<16x8xf32>, vector<16x16xf32> -> vector<16x16xf32>
    %cst_43 = arith.constant 0.353553385 : f32
    %103 = vector.broadcast %cst_43 : f32 to vector<16x16xf32>
    %104 = arith.mulf %102, %103 : vector<16x16xf32>
    %105 = arith.addf %104, %25 : vector<16x16xf32>
    %cst_44 = arith.constant dense<0xFF800000> : vector<16xf32>
    %106 = vector.multi_reduction <maximumf>, %105, %cst_44 [1] : vector<16x16xf32> to vector<16xf32>
    %107 = vector.shape_cast %106 : vector<16xf32> to vector<16x1xf32>
    %108 = vector.broadcast %107 : vector<16x1xf32> to vector<16x16xf32>
    %109 = arith.subf %105, %108 : vector<16x16xf32>
    %110 = math.exp %109 : vector<16x16xf32>
    %cst_45 = arith.constant dense<0.000000e+00> : vector<16xf32>
    %111 = vector.multi_reduction <add>, %110, %cst_45 [1] : vector<16x16xf32> to vector<16xf32>
    %112 = vector.shape_cast %111 : vector<16xf32> to vector<16x1xf32>
    %113 = tpu.reciprocal %112 {approx = true} : vector<16x1xf32> -> vector<16x1xf32>
    %114 = vector.broadcast %113 : vector<16x1xf32> to vector<16x16xf32>
    %115 = arith.mulf %110, %114 : vector<16x16xf32>
    %cst_46 = arith.constant dense<0.000000e+00> : vector<16x8xf32>
    %116 = tpu.matmul %115, %101, %cst_46 {dimension_numbers = #tpu.dot_dimension_numbers<[1], [0], [0], [1], [0, 0, 1, 1], [], []>} : vector<16x16xf32>, vector<16x8xf32>, vector<16x8xf32> -> vector<16x8xf32>
    %117 = vector.extract_strided_slice %34 {offsets = [24, 0], sizes = [8, 32], strides = [1, 1]} : vector<32x32xf32> to vector<8x32xf32>
    %cst_47 = arith.constant dense<0.000000e+00> : vector<16x32xf32>
    %118 = tpu.matmul %116, %117, %cst_47 {dimension_numbers = #tpu.dot_dimension_numbers<[1], [0], [0], [1], [0, 0, 1, 1], [], []>} : vector<16x8xf32>, vector<8x32xf32>, vector<16x32xf32> -> vector<16x32xf32>
    %119 = arith.addf %98, %118 : vector<16x32xf32>
    %c0_48 = arith.constant 0 : index
    %c0_49 = arith.constant 0 : index
    %c0_50 = arith.constant 0 : index
    %120 = vector.load %arg8[%c0_48, %c0_49, %c0_50] : memref<2x1x32xf32, #tpu.memory_space<vmem>>, vector<1x1x32xf32>
    %121 = vector.shape_cast %120 : vector<1x1x32xf32> to vector<1x32xf32>
    %122 = vector.broadcast %121 : vector<1x32xf32> to vector<16x32xf32>
    %123 = arith.addf %119, %122 : vector<16x32xf32>
    %124 = arith.addf %11, %123 : vector<16x32xf32>
    %cst_51 = arith.constant dense<0.000000e+00> : vector<16xf32>
    %125 = vector.multi_reduction <add>, %124, %cst_51 [1] : vector<16x32xf32> to vector<16xf32>
    %126 = vector.shape_cast %125 : vector<16xf32> to vector<16x1xf32>
    %cst_52 = arith.constant 3.200000e+01 : f32
    %127 = vector.broadcast %cst_52 : f32 to vector<16x1xf32>
    %128 = arith.divf %126, %127 : vector<16x1xf32>
    %129 = vector.broadcast %128 : vector<16x1xf32> to vector<16x32xf32>
    %130 = arith.subf %124, %129 : vector<16x32xf32>
    %131 = arith.mulf %130, %130 : vector<16x32xf32>
    %cst_53 = arith.constant dense<0.000000e+00> : vector<16xf32>
    %132 = vector.multi_reduction <add>, %131, %cst_53 [1] : vector<16x32xf32> to vector<16xf32>
    %133 = vector.shape_cast %132 : vector<16xf32> to vector<16x1xf32>
    %cst_54 = arith.constant 3.200000e+01 : f32
    %134 = vector.broadcast %cst_54 : f32 to vector<16x1xf32>
    %135 = arith.divf %133, %134 : vector<16x1xf32>
    %136 = vector.broadcast %128 : vector<16x1xf32> to vector<16x32xf32>
    %137 = arith.subf %124, %136 : vector<16x32xf32>
    %cst_55 = arith.constant 9.99999974E-6 : f32
    %138 = vector.broadcast %cst_55 : f32 to vector<16x1xf32>
    %139 = arith.addf %135, %138 : vector<16x1xf32>
    %140 = math.rsqrt %139 : vector<16x1xf32>
    %141 = vector.broadcast %140 : vector<16x1xf32> to vector<16x32xf32>
    %142 = arith.mulf %137, %141 : vector<16x32xf32>
    %c0_56 = arith.constant 0 : index
    %c0_57 = arith.constant 0 : index
    %c0_58 = arith.constant 0 : index
    %143 = vector.load %arg9[%c0_56, %c0_57, %c0_58] : memref<2x1x32xf32, #tpu.memory_space<vmem>>, vector<1x1x32xf32>
    %144 = vector.shape_cast %143 : vector<1x1x32xf32> to vector<1x32xf32>
    %145 = vector.broadcast %144 : vector<1x32xf32> to vector<16x32xf32>
    %146 = arith.mulf %142, %145 : vector<16x32xf32>
    %c0_59 = arith.constant 0 : index
    %c0_60 = arith.constant 0 : index
    %c0_61 = arith.constant 0 : index
    %147 = vector.load %arg10[%c0_59, %c0_60, %c0_61] : memref<2x1x32xf32, #tpu.memory_space<vmem>>, vector<1x1x32xf32>
    %148 = vector.shape_cast %147 : vector<1x1x32xf32> to vector<1x32xf32>
    %149 = vector.broadcast %148 : vector<1x32xf32> to vector<16x32xf32>
    %150 = arith.addf %146, %149 : vector<16x32xf32>
    %c0_62 = arith.constant 0 : index
    %c0_63 = arith.constant 0 : index
    %c0_64 = arith.constant 0 : index
    %151 = vector.load %arg11[%c0_62, %c0_63, %c0_64] : memref<2x32x64xf32, #tpu.memory_space<vmem>>, vector<1x32x64xf32>
    %152 = vector.shape_cast %151 : vector<1x32x64xf32> to vector<32x64xf32>
    %cst_65 = arith.constant dense<0.000000e+00> : vector<16x64xf32>
    %153 = tpu.matmul %150, %152, %cst_65 {dimension_numbers = #tpu.dot_dimension_numbers<[1], [0], [0], [1], [0, 0, 1, 1], [], []>} : vector<16x32xf32>, vector<32x64xf32>, vector<16x64xf32> -> vector<16x64xf32>
    %c0_66 = arith.constant 0 : index
    %c0_67 = arith.constant 0 : index
    %c0_68 = arith.constant 0 : index
    %154 = vector.load %arg12[%c0_66, %c0_67, %c0_68] : memref<2x1x64xf32, #tpu.memory_space<vmem>>, vector<1x1x64xf32>
    %155 = vector.shape_cast %154 : vector<1x1x64xf32> to vector<1x64xf32>
    %156 = vector.broadcast %155 : vector<1x64xf32> to vector<16x64xf32>
    %157 = arith.addf %153, %156 : vector<16x64xf32>
    %cst_69 = arith.constant 0.000000e+00 : f32
    %158 = vector.broadcast %cst_69 : f32 to vector<16x64xf32>
    %159 = arith.maximumf %157, %158 : vector<16x64xf32>
    %c0_70 = arith.constant 0 : index
    %c0_71 = arith.constant 0 : index
    %c0_72 = arith.constant 0 : index
    %160 = vector.load %arg13[%c0_70, %c0_71, %c0_72] : memref<2x64x32xf32, #tpu.memory_space<vmem>>, vector<1x64x32xf32>
    %161 = vector.shape_cast %160 : vector<1x64x32xf32> to vector<64x32xf32>
    %cst_73 = arith.constant dense<0.000000e+00> : vector<16x32xf32>
    %162 = tpu.matmul %159, %161, %cst_73 {dimension_numbers = #tpu.dot_dimension_numbers<[1], [0], [0], [1], [0, 0, 1, 1], [], []>} : vector<16x64xf32>, vector<64x32xf32>, vector<16x32xf32> -> vector<16x32xf32>
    %c0_74 = arith.constant 0 : index
    %c0_75 = arith.constant 0 : index
    %c0_76 = arith.constant 0 : index
    %163 = vector.load %arg14[%c0_74, %c0_75, %c0_76] : memref<2x1x32xf32, #tpu.memory_space<vmem>>, vector<1x1x32xf32>
    %164 = vector.shape_cast %163 : vector<1x1x32xf32> to vector<1x32xf32>
    %165 = vector.broadcast %164 : vector<1x32xf32> to vector<16x32xf32>
    %166 = arith.addf %162, %165 : vector<16x32xf32>
    %167 = arith.addf %150, %166 : vector<16x32xf32>
    %cst_77 = arith.constant dense<0.000000e+00> : vector<16xf32>
    %168 = vector.multi_reduction <add>, %167, %cst_77 [1] : vector<16x32xf32> to vector<16xf32>
    %169 = vector.shape_cast %168 : vector<16xf32> to vector<16x1xf32>
    %cst_78 = arith.constant 3.200000e+01 : f32
    %170 = vector.broadcast %cst_78 : f32 to vector<16x1xf32>
    %171 = arith.divf %169, %170 : vector<16x1xf32>
    %172 = vector.broadcast %171 : vector<16x1xf32> to vector<16x32xf32>
    %173 = arith.subf %167, %172 : vector<16x32xf32>
    %174 = arith.mulf %173, %173 : vector<16x32xf32>
    %cst_79 = arith.constant dense<0.000000e+00> : vector<16xf32>
    %175 = vector.multi_reduction <add>, %174, %cst_79 [1] : vector<16x32xf32> to vector<16xf32>
    %176 = vector.shape_cast %175 : vector<16xf32> to vector<16x1xf32>
    %cst_80 = arith.constant 3.200000e+01 : f32
    %177 = vector.broadcast %cst_80 : f32 to vector<16x1xf32>
    %178 = arith.divf %176, %177 : vector<16x1xf32>
    %179 = vector.broadcast %171 : vector<16x1xf32> to vector<16x32xf32>
    %180 = arith.subf %167, %179 : vector<16x32xf32>
    %cst_81 = arith.constant 9.99999974E-6 : f32
    %181 = vector.broadcast %cst_81 : f32 to vector<16x1xf32>
    %182 = arith.addf %178, %181 : vector<16x1xf32>
    %183 = math.rsqrt %182 : vector<16x1xf32>
    %184 = vector.broadcast %183 : vector<16x1xf32> to vector<16x32xf32>
    %185 = arith.mulf %180, %184 : vector<16x32xf32>
    %c0_82 = arith.constant 0 : index
    %c0_83 = arith.constant 0 : index
    %c0_84 = arith.constant 0 : index
    %186 = vector.load %arg15[%c0_82, %c0_83, %c0_84] : memref<2x1x32xf32, #tpu.memory_space<vmem>>, vector<1x1x32xf32>
    %187 = vector.shape_cast %186 : vector<1x1x32xf32> to vector<1x32xf32>
    %188 = vector.broadcast %187 : vector<1x32xf32> to vector<16x32xf32>
    %189 = arith.mulf %185, %188 : vector<16x32xf32>
    %c0_85 = arith.constant 0 : index
    %c0_86 = arith.constant 0 : index
    %c0_87 = arith.constant 0 : index
    %190 = vector.load %arg16[%c0_85, %c0_86, %c0_87] : memref<2x1x32xf32, #tpu.memory_space<vmem>>, vector<1x1x32xf32>
    %191 = vector.shape_cast %190 : vector<1x1x32xf32> to vector<1x32xf32>
    %192 = vector.broadcast %191 : vector<1x32xf32> to vector<16x32xf32>
    %193 = arith.addf %189, %192 : vector<16x32xf32>
    %c1 = arith.constant 1 : index
    %c0_88 = arith.constant 0 : index
    %c0_89 = arith.constant 0 : index
    %194 = vector.load %arg5[%c1, %c0_88, %c0_89] : memref<2x32x96xf32, #tpu.memory_space<vmem>>, vector<1x32x96xf32>
    %195 = vector.shape_cast %194 : vector<1x32x96xf32> to vector<32x96xf32>
    %cst_90 = arith.constant dense<0.000000e+00> : vector<16x96xf32>
    %196 = tpu.matmul %193, %195, %cst_90 {dimension_numbers = #tpu.dot_dimension_numbers<[1], [0], [0], [1], [0, 0, 1, 1], [], []>} : vector<16x32xf32>, vector<32x96xf32>, vector<16x96xf32> -> vector<16x96xf32>
    %c1_91 = arith.constant 1 : index
    %c0_92 = arith.constant 0 : index
    %c0_93 = arith.constant 0 : index
    %197 = vector.load %arg6[%c1_91, %c0_92, %c0_93] : memref<2x1x96xf32, #tpu.memory_space<vmem>>, vector<1x1x96xf32>
    %198 = vector.shape_cast %197 : vector<1x1x96xf32> to vector<1x96xf32>
    %199 = vector.broadcast %198 : vector<1x96xf32> to vector<16x96xf32>
    %200 = arith.addf %196, %199 : vector<16x96xf32>
    %c1_94 = arith.constant 1 : index
    %c0_95 = arith.constant 0 : index
    %c0_96 = arith.constant 0 : index
    %201 = vector.load %arg7[%c1_94, %c0_95, %c0_96] : memref<2x32x32xf32, #tpu.memory_space<vmem>>, vector<1x32x32xf32>
    %202 = vector.shape_cast %201 : vector<1x32x32xf32> to vector<32x32xf32>
    %cst_97 = arith.constant 0.000000e+00 : f32
    %203 = vector.broadcast %cst_97 : f32 to vector<16x32xf32>
    %204 = vector.extract_strided_slice %200 {offsets = [0, 0], sizes = [16, 8], strides = [1, 1]} : vector<16x96xf32> to vector<16x8xf32>
    %205 = vector.extract_strided_slice %200 {offsets = [0, 32], sizes = [16, 8], strides = [1, 1]} : vector<16x96xf32> to vector<16x8xf32>
    %206 = vector.extract_strided_slice %200 {offsets = [0, 64], sizes = [16, 8], strides = [1, 1]} : vector<16x96xf32> to vector<16x8xf32>
    %cst_98 = arith.constant dense<0.000000e+00> : vector<16x16xf32>
    %207 = tpu.matmul %204, %205, %cst_98 {dimension_numbers = #tpu.dot_dimension_numbers<[1], [1], [0], [0], [0, 0, 1, 0], [], []>} : vector<16x8xf32>, vector<16x8xf32>, vector<16x16xf32> -> vector<16x16xf32>
    %cst_99 = arith.constant 0.353553385 : f32
    %208 = vector.broadcast %cst_99 : f32 to vector<16x16xf32>
    %209 = arith.mulf %207, %208 : vector<16x16xf32>
    %210 = arith.addf %209, %25 : vector<16x16xf32>
    %cst_100 = arith.constant dense<0xFF800000> : vector<16xf32>
    %211 = vector.multi_reduction <maximumf>, %210, %cst_100 [1] : vector<16x16xf32> to vector<16xf32>
    %212 = vector.shape_cast %211 : vector<16xf32> to vector<16x1xf32>
    %213 = vector.broadcast %212 : vector<16x1xf32> to vector<16x16xf32>
    %214 = arith.subf %210, %213 : vector<16x16xf32>
    %215 = math.exp %214 : vector<16x16xf32>
    %cst_101 = arith.constant dense<0.000000e+00> : vector<16xf32>
    %216 = vector.multi_reduction <add>, %215, %cst_101 [1] : vector<16x16xf32> to vector<16xf32>
    %217 = vector.shape_cast %216 : vector<16xf32> to vector<16x1xf32>
    %218 = tpu.reciprocal %217 {approx = true} : vector<16x1xf32> -> vector<16x1xf32>
    %219 = vector.broadcast %218 : vector<16x1xf32> to vector<16x16xf32>
    %220 = arith.mulf %215, %219 : vector<16x16xf32>
    %cst_102 = arith.constant dense<0.000000e+00> : vector<16x8xf32>
    %221 = tpu.matmul %220, %206, %cst_102 {dimension_numbers = #tpu.dot_dimension_numbers<[1], [0], [0], [1], [0, 0, 1, 1], [], []>} : vector<16x16xf32>, vector<16x8xf32>, vector<16x8xf32> -> vector<16x8xf32>
    %222 = vector.extract_strided_slice %202 {offsets = [0, 0], sizes = [8, 32], strides = [1, 1]} : vector<32x32xf32> to vector<8x32xf32>
    %cst_103 = arith.constant dense<0.000000e+00> : vector<16x32xf32>
    %223 = tpu.matmul %221, %222, %cst_103 {dimension_numbers = #tpu.dot_dimension_numbers<[1], [0], [0], [1], [0, 0, 1, 1], [], []>} : vector<16x8xf32>, vector<8x32xf32>, vector<16x32xf32> -> vector<16x32xf32>
    %224 = arith.addf %203, %223 : vector<16x32xf32>
    %225 = vector.extract_strided_slice %200 {offsets = [0, 8], sizes = [16, 8], strides = [1, 1]} : vector<16x96xf32> to vector<16x8xf32>
    %226 = vector.extract_strided_slice %200 {offsets = [0, 40], sizes = [16, 8], strides = [1, 1]} : vector<16x96xf32> to vector<16x8xf32>
    %227 = vector.extract_strided_slice %200 {offsets = [0, 72], sizes = [16, 8], strides = [1, 1]} : vector<16x96xf32> to vector<16x8xf32>
    %cst_104 = arith.constant dense<0.000000e+00> : vector<16x16xf32>
    %228 = tpu.matmul %225, %226, %cst_104 {dimension_numbers = #tpu.dot_dimension_numbers<[1], [1], [0], [0], [0, 0, 1, 0], [], []>} : vector<16x8xf32>, vector<16x8xf32>, vector<16x16xf32> -> vector<16x16xf32>
    %cst_105 = arith.constant 0.353553385 : f32
    %229 = vector.broadcast %cst_105 : f32 to vector<16x16xf32>
    %230 = arith.mulf %228, %229 : vector<16x16xf32>
    %231 = arith.addf %230, %25 : vector<16x16xf32>
    %cst_106 = arith.constant dense<0xFF800000> : vector<16xf32>
    %232 = vector.multi_reduction <maximumf>, %231, %cst_106 [1] : vector<16x16xf32> to vector<16xf32>
    %233 = vector.shape_cast %232 : vector<16xf32> to vector<16x1xf32>
    %234 = vector.broadcast %233 : vector<16x1xf32> to vector<16x16xf32>
    %235 = arith.subf %231, %234 : vector<16x16xf32>
    %236 = math.exp %235 : vector<16x16xf32>
    %cst_107 = arith.constant dense<0.000000e+00> : vector<16xf32>
    %237 = vector.multi_reduction <add>, %236, %cst_107 [1] : vector<16x16xf32> to vector<16xf32>
    %238 = vector.shape_cast %237 : vector<16xf32> to vector<16x1xf32>
    %239 = tpu.reciprocal %238 {approx = true} : vector<16x1xf32> -> vector<16x1xf32>
    %240 = vector.broadcast %239 : vector<16x1xf32> to vector<16x16xf32>
    %241 = arith.mulf %236, %240 : vector<16x16xf32>
    %cst_108 = arith.constant dense<0.000000e+00> : vector<16x8xf32>
    %242 = tpu.matmul %241, %227, %cst_108 {dimension_numbers = #tpu.dot_dimension_numbers<[1], [0], [0], [1], [0, 0, 1, 1], [], []>} : vector<16x16xf32>, vector<16x8xf32>, vector<16x8xf32> -> vector<16x8xf32>
    %243 = vector.extract_strided_slice %202 {offsets = [8, 0], sizes = [8, 32], strides = [1, 1]} : vector<32x32xf32> to vector<8x32xf32>
    %cst_109 = arith.constant dense<0.000000e+00> : vector<16x32xf32>
    %244 = tpu.matmul %242, %243, %cst_109 {dimension_numbers = #tpu.dot_dimension_numbers<[1], [0], [0], [1], [0, 0, 1, 1], [], []>} : vector<16x8xf32>, vector<8x32xf32>, vector<16x32xf32> -> vector<16x32xf32>
    %245 = arith.addf %224, %244 : vector<16x32xf32>
    %246 = vector.extract_strided_slice %200 {offsets = [0, 16], sizes = [16, 8], strides = [1, 1]} : vector<16x96xf32> to vector<16x8xf32>
    %247 = vector.extract_strided_slice %200 {offsets = [0, 48], sizes = [16, 8], strides = [1, 1]} : vector<16x96xf32> to vector<16x8xf32>
    %248 = vector.extract_strided_slice %200 {offsets = [0, 80], sizes = [16, 8], strides = [1, 1]} : vector<16x96xf32> to vector<16x8xf32>
    %cst_110 = arith.constant dense<0.000000e+00> : vector<16x16xf32>
    %249 = tpu.matmul %246, %247, %cst_110 {dimension_numbers = #tpu.dot_dimension_numbers<[1], [1], [0], [0], [0, 0, 1, 0], [], []>} : vector<16x8xf32>, vector<16x8xf32>, vector<16x16xf32> -> vector<16x16xf32>
    %cst_111 = arith.constant 0.353553385 : f32
    %250 = vector.broadcast %cst_111 : f32 to vector<16x16xf32>
    %251 = arith.mulf %249, %250 : vector<16x16xf32>
    %252 = arith.addf %251, %25 : vector<16x16xf32>
    %cst_112 = arith.constant dense<0xFF800000> : vector<16xf32>
    %253 = vector.multi_reduction <maximumf>, %252, %cst_112 [1] : vector<16x16xf32> to vector<16xf32>
    %254 = vector.shape_cast %253 : vector<16xf32> to vector<16x1xf32>
    %255 = vector.broadcast %254 : vector<16x1xf32> to vector<16x16xf32>
    %256 = arith.subf %252, %255 : vector<16x16xf32>
    %257 = math.exp %256 : vector<16x16xf32>
    %cst_113 = arith.constant dense<0.000000e+00> : vector<16xf32>
    %258 = vector.multi_reduction <add>, %257, %cst_113 [1] : vector<16x16xf32> to vector<16xf32>
    %259 = vector.shape_cast %258 : vector<16xf32> to vector<16x1xf32>
    %260 = tpu.reciprocal %259 {approx = true} : vector<16x1xf32> -> vector<16x1xf32>
    %261 = vector.broadcast %260 : vector<16x1xf32> to vector<16x16xf32>
    %262 = arith.mulf %257, %261 : vector<16x16xf32>
    %cst_114 = arith.constant dense<0.000000e+00> : vector<16x8xf32>
    %263 = tpu.matmul %262, %248, %cst_114 {dimension_numbers = #tpu.dot_dimension_numbers<[1], [0], [0], [1], [0, 0, 1, 1], [], []>} : vector<16x16xf32>, vector<16x8xf32>, vector<16x8xf32> -> vector<16x8xf32>
    %264 = vector.extract_strided_slice %202 {offsets = [16, 0], sizes = [8, 32], strides = [1, 1]} : vector<32x32xf32> to vector<8x32xf32>
    %cst_115 = arith.constant dense<0.000000e+00> : vector<16x32xf32>
    %265 = tpu.matmul %263, %264, %cst_115 {dimension_numbers = #tpu.dot_dimension_numbers<[1], [0], [0], [1], [0, 0, 1, 1], [], []>} : vector<16x8xf32>, vector<8x32xf32>, vector<16x32xf32> -> vector<16x32xf32>
    %266 = arith.addf %245, %265 : vector<16x32xf32>
    %267 = vector.extract_strided_slice %200 {offsets = [0, 24], sizes = [16, 8], strides = [1, 1]} : vector<16x96xf32> to vector<16x8xf32>
    %268 = vector.extract_strided_slice %200 {offsets = [0, 56], sizes = [16, 8], strides = [1, 1]} : vector<16x96xf32> to vector<16x8xf32>
    %269 = vector.extract_strided_slice %200 {offsets = [0, 88], sizes = [16, 8], strides = [1, 1]} : vector<16x96xf32> to vector<16x8xf32>
    %cst_116 = arith.constant dense<0.000000e+00> : vector<16x16xf32>
    %270 = tpu.matmul %267, %268, %cst_116 {dimension_numbers = #tpu.dot_dimension_numbers<[1], [1], [0], [0], [0, 0, 1, 0], [], []>} : vector<16x8xf32>, vector<16x8xf32>, vector<16x16xf32> -> vector<16x16xf32>
    %cst_117 = arith.constant 0.353553385 : f32
    %271 = vector.broadcast %cst_117 : f32 to vector<16x16xf32>
    %272 = arith.mulf %270, %271 : vector<16x16xf32>
    %273 = arith.addf %272, %25 : vector<16x16xf32>
    %cst_118 = arith.constant dense<0xFF800000> : vector<16xf32>
    %274 = vector.multi_reduction <maximumf>, %273, %cst_118 [1] : vector<16x16xf32> to vector<16xf32>
    %275 = vector.shape_cast %274 : vector<16xf32> to vector<16x1xf32>
    %276 = vector.broadcast %275 : vector<16x1xf32> to vector<16x16xf32>
    %277 = arith.subf %273, %276 : vector<16x16xf32>
    %278 = math.exp %277 : vector<16x16xf32>
    %cst_119 = arith.constant dense<0.000000e+00> : vector<16xf32>
    %279 = vector.multi_reduction <add>, %278, %cst_119 [1] : vector<16x16xf32> to vector<16xf32>
    %280 = vector.shape_cast %279 : vector<16xf32> to vector<16x1xf32>
    %281 = tpu.reciprocal %280 {approx = true} : vector<16x1xf32> -> vector<16x1xf32>
    %282 = vector.broadcast %281 : vector<16x1xf32> to vector<16x16xf32>
    %283 = arith.mulf %278, %282 : vector<16x16xf32>
    %cst_120 = arith.constant dense<0.000000e+00> : vector<16x8xf32>
    %284 = tpu.matmul %283, %269, %cst_120 {dimension_numbers = #tpu.dot_dimension_numbers<[1], [0], [0], [1], [0, 0, 1, 1], [], []>} : vector<16x16xf32>, vector<16x8xf32>, vector<16x8xf32> -> vector<16x8xf32>
    %285 = vector.extract_strided_slice %202 {offsets = [24, 0], sizes = [8, 32], strides = [1, 1]} : vector<32x32xf32> to vector<8x32xf32>
    %cst_121 = arith.constant dense<0.000000e+00> : vector<16x32xf32>
    %286 = tpu.matmul %284, %285, %cst_121 {dimension_numbers = #tpu.dot_dimension_numbers<[1], [0], [0], [1], [0, 0, 1, 1], [], []>} : vector<16x8xf32>, vector<8x32xf32>, vector<16x32xf32> -> vector<16x32xf32>
    %287 = arith.addf %266, %286 : vector<16x32xf32>
    %c1_122 = arith.constant 1 : index
    %c0_123 = arith.constant 0 : index
    %c0_124 = arith.constant 0 : index
    %288 = vector.load %arg8[%c1_122, %c0_123, %c0_124] : memref<2x1x32xf32, #tpu.memory_space<vmem>>, vector<1x1x32xf32>
    %289 = vector.shape_cast %288 : vector<1x1x32xf32> to vector<1x32xf32>
    %290 = vector.broadcast %289 : vector<1x32xf32> to vector<16x32xf32>
    %291 = arith.addf %287, %290 : vector<16x32xf32>
    %292 = arith.addf %193, %291 : vector<16x32xf32>
    %cst_125 = arith.constant dense<0.000000e+00> : vector<16xf32>
    %293 = vector.multi_reduction <add>, %292, %cst_125 [1] : vector<16x32xf32> to vector<16xf32>
    %294 = vector.shape_cast %293 : vector<16xf32> to vector<16x1xf32>
    %cst_126 = arith.constant 3.200000e+01 : f32
    %295 = vector.broadcast %cst_126 : f32 to vector<16x1xf32>
    %296 = arith.divf %294, %295 : vector<16x1xf32>
    %297 = vector.broadcast %296 : vector<16x1xf32> to vector<16x32xf32>
    %298 = arith.subf %292, %297 : vector<16x32xf32>
    %299 = arith.mulf %298, %298 : vector<16x32xf32>
    %cst_127 = arith.constant dense<0.000000e+00> : vector<16xf32>
    %300 = vector.multi_reduction <add>, %299, %cst_127 [1] : vector<16x32xf32> to vector<16xf32>
    %301 = vector.shape_cast %300 : vector<16xf32> to vector<16x1xf32>
    %cst_128 = arith.constant 3.200000e+01 : f32
    %302 = vector.broadcast %cst_128 : f32 to vector<16x1xf32>
    %303 = arith.divf %301, %302 : vector<16x1xf32>
    %304 = vector.broadcast %296 : vector<16x1xf32> to vector<16x32xf32>
    %305 = arith.subf %292, %304 : vector<16x32xf32>
    %cst_129 = arith.constant 9.99999974E-6 : f32
    %306 = vector.broadcast %cst_129 : f32 to vector<16x1xf32>
    %307 = arith.addf %303, %306 : vector<16x1xf32>
    %308 = math.rsqrt %307 : vector<16x1xf32>
    %309 = vector.broadcast %308 : vector<16x1xf32> to vector<16x32xf32>
    %310 = arith.mulf %305, %309 : vector<16x32xf32>
    %c1_130 = arith.constant 1 : index
    %c0_131 = arith.constant 0 : index
    %c0_132 = arith.constant 0 : index
    %311 = vector.load %arg9[%c1_130, %c0_131, %c0_132] : memref<2x1x32xf32, #tpu.memory_space<vmem>>, vector<1x1x32xf32>
    %312 = vector.shape_cast %311 : vector<1x1x32xf32> to vector<1x32xf32>
    %313 = vector.broadcast %312 : vector<1x32xf32> to vector<16x32xf32>
    %314 = arith.mulf %310, %313 : vector<16x32xf32>
    %c1_133 = arith.constant 1 : index
    %c0_134 = arith.constant 0 : index
    %c0_135 = arith.constant 0 : index
    %315 = vector.load %arg10[%c1_133, %c0_134, %c0_135] : memref<2x1x32xf32, #tpu.memory_space<vmem>>, vector<1x1x32xf32>
    %316 = vector.shape_cast %315 : vector<1x1x32xf32> to vector<1x32xf32>
    %317 = vector.broadcast %316 : vector<1x32xf32> to vector<16x32xf32>
    %318 = arith.addf %314, %317 : vector<16x32xf32>
    %c1_136 = arith.constant 1 : index
    %c0_137 = arith.constant 0 : index
    %c0_138 = arith.constant 0 : index
    %319 = vector.load %arg11[%c1_136, %c0_137, %c0_138] : memref<2x32x64xf32, #tpu.memory_space<vmem>>, vector<1x32x64xf32>
    %320 = vector.shape_cast %319 : vector<1x32x64xf32> to vector<32x64xf32>
    %cst_139 = arith.constant dense<0.000000e+00> : vector<16x64xf32>
    %321 = tpu.matmul %318, %320, %cst_139 {dimension_numbers = #tpu.dot_dimension_numbers<[1], [0], [0], [1], [0, 0, 1, 1], [], []>} : vector<16x32xf32>, vector<32x64xf32>, vector<16x64xf32> -> vector<16x64xf32>
    %c1_140 = arith.constant 1 : index
    %c0_141 = arith.constant 0 : index
    %c0_142 = arith.constant 0 : index
    %322 = vector.load %arg12[%c1_140, %c0_141, %c0_142] : memref<2x1x64xf32, #tpu.memory_space<vmem>>, vector<1x1x64xf32>
    %323 = vector.shape_cast %322 : vector<1x1x64xf32> to vector<1x64xf32>
    %324 = vector.broadcast %323 : vector<1x64xf32> to vector<16x64xf32>
    %325 = arith.addf %321, %324 : vector<16x64xf32>
    %cst_143 = arith.constant 0.000000e+00 : f32
    %326 = vector.broadcast %cst_143 : f32 to vector<16x64xf32>
    %327 = arith.maximumf %325, %326 : vector<16x64xf32>
    %c1_144 = arith.constant 1 : index
    %c0_145 = arith.constant 0 : index
    %c0_146 = arith.constant 0 : index
    %328 = vector.load %arg13[%c1_144, %c0_145, %c0_146] : memref<2x64x32xf32, #tpu.memory_space<vmem>>, vector<1x64x32xf32>
    %329 = vector.shape_cast %328 : vector<1x64x32xf32> to vector<64x32xf32>
    %cst_147 = arith.constant dense<0.000000e+00> : vector<16x32xf32>
    %330 = tpu.matmul %327, %329, %cst_147 {dimension_numbers = #tpu.dot_dimension_numbers<[1], [0], [0], [1], [0, 0, 1, 1], [], []>} : vector<16x64xf32>, vector<64x32xf32>, vector<16x32xf32> -> vector<16x32xf32>
    %c1_148 = arith.constant 1 : index
    %c0_149 = arith.constant 0 : index
    %c0_150 = arith.constant 0 : index
    %331 = vector.load %arg14[%c1_148, %c0_149, %c0_150] : memref<2x1x32xf32, #tpu.memory_space<vmem>>, vector<1x1x32xf32>
    %332 = vector.shape_cast %331 : vector<1x1x32xf32> to vector<1x32xf32>
    %333 = vector.broadcast %332 : vector<1x32xf32> to vector<16x32xf32>
    %334 = arith.addf %330, %333 : vector<16x32xf32>
    %335 = arith.addf %318, %334 : vector<16x32xf32>
    %cst_151 = arith.constant dense<0.000000e+00> : vector<16xf32>
    %336 = vector.multi_reduction <add>, %335, %cst_151 [1] : vector<16x32xf32> to vector<16xf32>
    %337 = vector.shape_cast %336 : vector<16xf32> to vector<16x1xf32>
    %cst_152 = arith.constant 3.200000e+01 : f32
    %338 = vector.broadcast %cst_152 : f32 to vector<16x1xf32>
    %339 = arith.divf %337, %338 : vector<16x1xf32>
    %340 = vector.broadcast %339 : vector<16x1xf32> to vector<16x32xf32>
    %341 = arith.subf %335, %340 : vector<16x32xf32>
    %342 = arith.mulf %341, %341 : vector<16x32xf32>
    %cst_153 = arith.constant dense<0.000000e+00> : vector<16xf32>
    %343 = vector.multi_reduction <add>, %342, %cst_153 [1] : vector<16x32xf32> to vector<16xf32>
    %344 = vector.shape_cast %343 : vector<16xf32> to vector<16x1xf32>
    %cst_154 = arith.constant 3.200000e+01 : f32
    %345 = vector.broadcast %cst_154 : f32 to vector<16x1xf32>
    %346 = arith.divf %344, %345 : vector<16x1xf32>
    %347 = vector.broadcast %339 : vector<16x1xf32> to vector<16x32xf32>
    %348 = arith.subf %335, %347 : vector<16x32xf32>
    %cst_155 = arith.constant 9.99999974E-6 : f32
    %349 = vector.broadcast %cst_155 : f32 to vector<16x1xf32>
    %350 = arith.addf %346, %349 : vector<16x1xf32>
    %351 = math.rsqrt %350 : vector<16x1xf32>
    %352 = vector.broadcast %351 : vector<16x1xf32> to vector<16x32xf32>
    %353 = arith.mulf %348, %352 : vector<16x32xf32>
    %c1_156 = arith.constant 1 : index
    %c0_157 = arith.constant 0 : index
    %c0_158 = arith.constant 0 : index
    %354 = vector.load %arg15[%c1_156, %c0_157, %c0_158] : memref<2x1x32xf32, #tpu.memory_space<vmem>>, vector<1x1x32xf32>
    %355 = vector.shape_cast %354 : vector<1x1x32xf32> to vector<1x32xf32>
    %356 = vector.broadcast %355 : vector<1x32xf32> to vector<16x32xf32>
    %357 = arith.mulf %353, %356 : vector<16x32xf32>
    %c1_159 = arith.constant 1 : index
    %c0_160 = arith.constant 0 : index
    %c0_161 = arith.constant 0 : index
    %358 = vector.load %arg16[%c1_159, %c0_160, %c0_161] : memref<2x1x32xf32, #tpu.memory_space<vmem>>, vector<1x1x32xf32>
    %359 = vector.shape_cast %358 : vector<1x1x32xf32> to vector<1x32xf32>
    %360 = vector.broadcast %359 : vector<1x32xf32> to vector<16x32xf32>
    %361 = arith.addf %357, %360 : vector<16x32xf32>
    %c0_162 = arith.constant 0 : index
    %c0_163 = arith.constant 0 : index
    %362 = vector.load %arg17[%c0_162, %c0_163] : memref<32x64xf32, #tpu.memory_space<vmem>>, vector<32x64xf32>
    %cst_164 = arith.constant dense<0.000000e+00> : vector<16x64xf32>
    %363 = tpu.matmul %361, %362, %cst_164 {dimension_numbers = #tpu.dot_dimension_numbers<[1], [0], [0], [1], [0, 0, 1, 1], [], []>} : vector<16x32xf32>, vector<32x64xf32>, vector<16x64xf32> -> vector<16x64xf32>
    %c0_165 = arith.constant 0 : index
    %c0_166 = arith.constant 0 : index
    %364 = vector.load %arg18[%c0_165, %c0_166] : memref<1x64xf32, #tpu.memory_space<vmem>>, vector<1x64xf32>
    %365 = vector.broadcast %364 : vector<1x64xf32> to vector<16x64xf32>
    %366 = arith.addf %363, %365 : vector<16x64xf32>
    %cst_167 = arith.constant dense<0xFF800000> : vector<16xf32>
    %367 = vector.multi_reduction <maximumf>, %366, %cst_167 [1] : vector<16x64xf32> to vector<16xf32>
    %368 = vector.shape_cast %367 : vector<16xf32> to vector<16x1xf32>
    %369 = vector.broadcast %368 : vector<16x1xf32> to vector<16x64xf32>
    %370 = arith.subf %366, %369 : vector<16x64xf32>
    %371 = math.exp %370 : vector<16x64xf32>
    %cst_168 = arith.constant dense<0.000000e+00> : vector<16xf32>
    %372 = vector.multi_reduction <add>, %371, %cst_168 [1] : vector<16x64xf32> to vector<16xf32>
    %373 = vector.shape_cast %372 : vector<16xf32> to vector<16x1xf32>
    %374 = math.log %373 : vector<16x1xf32>
    %375 = arith.addf %374, %368 : vector<16x1xf32>
    %376 = vector.broadcast %375 : vector<16x1xf32> to vector<16x64xf32>
    %377 = arith.subf %366, %376 : vector<16x64xf32>
    %c0_169 = arith.constant 0 : index
    %c0_170 = arith.constant 0 : index
    %378 = vector.load %arg19[%c0_169, %c0_170] : memref<16x64xf32, #tpu.memory_space<vmem>>, vector<16x64xf32>
    tpu.vector_store %arg19[%c0_169, %c0_170], %377 {strides = array<i32>} : memref<16x64xf32, #tpu.memory_space<vmem>>, vector<16x64xf32>,
    return
  }
}

</mosaic_0001>

<llo_original>
// kernel: _bert_forward.1
$region0: #{_bert_forward.1}
  #allocation0 [shape = 'u32[]', space=smem, size = 0x4, offset = 0x4, fixed_abs, tag = 'smem constant byte address 0x4 - core index']
  #allocation1 [shape = 'u32[72,128]{1,0:T(1,128)}', space=vmem, size = 0x9000, scoped, tag = 'internal scratch']
  %s0 = inlined_call_operand.vmem [shape: s32[16,1], index: 0, kind: input, shape index: {}]
  %s1 = inlined_call_operand.vmem [shape: s32[1,16], index: 1, kind: input, shape index: {}]
  %s2 = inlined_call_operand.hbm [shape: f32[16,16], index: 2, kind: input, shape index: {}]
  %s3 = inlined_call_operand.vmem [shape: f32[64,32], index: 3, kind: input, shape index: {}]
  %s4 = inlined_call_operand.hbm [shape: f32[16,32], index: 4, kind: input, shape index: {}]
  %s5 = inlined_call_operand.vmem [shape: f32[2,32,96], index: 5, kind: input, shape index: {}]
  %s6 = inlined_call_operand.hbm [shape: f32[2,1,96], index: 6, kind: input, shape index: {}]
  %s7 = inlined_call_operand.vmem [shape: f32[2,32,32], index: 7, kind: input, shape index: {}]
  %s8 = inlined_call_operand.hbm [shape: f32[2,1,32], index: 8, kind: input, shape index: {}]
  %s9 = inlined_call_operand.hbm [shape: f32[2,1,32], index: 9, kind: input, shape index: {}]
  %s10 = inlined_call_operand.hbm [shape: f32[2,1,32], index: 10, kind: input, shape index: {}]
  %s11 = inlined_call_operand.vmem [shape: f32[2,32,64], index: 11, kind: input, shape index: {}]
  %s12 = inlined_call_operand.hbm [shape: f32[2,1,64], index: 12, kind: input, shape index: {}]
  %s13 = inlined_call_operand.vmem [shape: f32[2,64,32], index: 13, kind: input, shape index: {}]
  %s14 = inlined_call_operand.hbm [shape: f32[2,1,32], index: 14, kind: input, shape index: {}]
  %s15 = inlined_call_operand.hbm [shape: f32[2,1,32], index: 15, kind: input, shape index: {}]
  %s16 = inlined_call_operand.hbm [shape: f32[2,1,32], index: 16, kind: input, shape index: {}]
  %s17 = inlined_call_operand.vmem [shape: f32[32,64], index: 17, kind: input, shape index: {}]
  %s18 = inlined_call_operand.hbm [shape: f32[1,64], index: 18, kind: input, shape index: {}]
  %s19 = inlined_call_operand.hbm [shape: f32[16,64], index: 19, kind: output, shape index: {}]
  %s20 = sld [smem:[#allocation0]]
  $region130: #{_bert_forward.1} parent=0
    _
  %s22 = ssub.s32 1, %s20
  %s23 = scalar_select 0, %s22, %s20
  $region1: #{_bert_forward.1} parent=0
    #allocation2 [shape = 'u8[8192]{0}', space=vmem, size = 0x2000, scoped, tag = 'input window, operand 2, single buffered']
    #allocation3 [shape = 's32[1]{0}', space=sflag, size = 0x4, scoped, tag = 'scoped memory for _bert_forward.1']
    #allocation4 [shape = 's32[1]{0}', space=sflag, size = 0x4, scoped, tag = 'scoped memory for _bert_forward.1']
    #allocation5 [shape = 'u8[8192]{0}', space=vmem, size = 0x2000, scoped, tag = 'input window, operand 4, single buffered']
    #allocation6 [shape = 's32[1]{0}', space=sflag, size = 0x4, scoped, tag = 'scoped memory for _bert_forward.1']
    #allocation7 [shape = 'u8[1024]{0}', space=vmem, size = 0x400, scoped, tag = 'input window, operand 6, single buffered']
    #allocation8 [shape = 'u8[1024]{0}', space=vmem, size = 0x400, scoped, tag = 'input window, operand 8, single buffered']
    #allocation9 [shape = 's32[1]{0}', space=sflag, size = 0x4, scoped, tag = 'scoped memory for _bert_forward.1']
    #allocation10 [shape = 'u8[1024]{0}', space=vmem, size = 0x400, scoped, tag = 'input window, operand 9, single buffered']
    #allocation11 [shape = 'u8[1024]{0}', space=vmem, size = 0x400, scoped, tag = 'input window, operand 10, single buffered']
    #allocation12 [shape = 's32[1]{0}', space=sflag, size = 0x4, scoped, tag = 'scoped memory for _bert_forward.1']
    #allocation13 [shape = 'u8[1024]{0}', space=vmem, size = 0x400, scoped, tag = 'input window, operand 12, single buffered']
    #allocation14 [shape = 'u8[1024]{0}', space=vmem, size = 0x400, scoped, tag = 'input window, operand 14, single buffered']
    #allocation15 [shape = 's32[1]{0}', space=sflag, size = 0x4, scoped, tag = 'scoped memory for _bert_forward.1']
    #allocation16 [shape = 'u8[1024]{0}', space=vmem, size = 0x400, scoped, tag = 'input window, operand 15, single buffered']
    #allocation17 [shape = 'u8[1024]{0}', space=vmem, size = 0x400, scoped, tag = 'input window, operand 16, single buffered']
    #allocation18 [shape = 's32[1]{0}', space=sflag, size = 0x4, scoped, tag = 'scoped memory for _bert_forward.1']
    #allocation19 [shape = 'u8[512]{0}', space=vmem, size = 0x400, scoped, tag = 'input window, operand 18, single buffered']
    #allocation20 [shape = 'u8[8192]{0}', space=vmem, size = 0x2000, scoped, tag = 'output window, operand 0, single buffered']
    %24 = vsyncpa [#allocation3], 0
    %25 = vsyncpa [#allocation6], 0
    %26 = vsyncpa [#allocation9], 0
    %27 = vsyncpa [#allocation12], 0
    %28 = vsyncpa [#allocation15], 0
    %29 = vsyncpa [#allocation18], 0
    %30 = vsyncpa [#allocation4], 0
    // Predicated region
    $region2: #{_bert_forward.1} parent=1 // pred_check
      _
    $region3: #{_bert_forward.1} parent=1 // pred_check_branch
      %32 = sbr.rel (0) target = $region5
    $region4: #{_bert_forward.1} parent=1 // pred_region
      _
    $region5: #{_bert_forward.1} parent=1 // pred_fallthru
      _
    // Predicated region
    $region6: #{_bert_forward.1} parent=1 // pred_check
      _
    $region7: #{_bert_forward.1} parent=1 // pred_check_branch
      %34 = sbr.rel (0) target = $region9
    $region8: #{_bert_forward.1} parent=1 // pred_region
      _
    $region9: #{_bert_forward.1} parent=1 // pred_fallthru
      _
    // Predicated region
    $region10: #{_bert_forward.1} parent=1 // pred_check
      _
    $region11: #{_bert_forward.1} parent=1 // pred_check_branch
      %36 = sbr.rel (0) target = $region13
    $region12: #{_bert_forward.1} parent=1 // pred_region
      %38 = vsyncadd [#allocation3], 0
      %s39 = sshll.u32 %s2, 4
      %s40 = int_to_ptr.hbm [resolvable:$true] %s39
      %s41 = sshll.u32 [#allocation2], 4
      %s42 = int_to_ptr.vmem [resolvable:$true] %s41
      %47 = dma.hbm_to_vmem [thread:$0]  %s40, 256, %s42, [#allocation3], 128, 128, 8
    $region13: #{_bert_forward.1} parent=1 // pred_fallthru
      _
    // Predicated region
    $region14: #{_bert_forward.1} parent=1 // pred_check
      _
    $region15: #{_bert_forward.1} parent=1 // pred_check_branch
      %49 = sbr.rel (0) target = $region17
    $region16: #{_bert_forward.1} parent=1 // pred_region
      _
    $region17: #{_bert_forward.1} parent=1 // pred_fallthru
      _
    // Predicated region
    $region18: #{_bert_forward.1} parent=1 // pred_check
      _
    $region19: #{_bert_forward.1} parent=1 // pred_check_branch
      %51 = sbr.rel (0) target = $region21
    $region20: #{_bert_forward.1} parent=1 // pred_region
      %53 = vsyncadd [#allocation6], 0
      %s54 = sshll.u32 %s4, 4
      %s55 = int_to_ptr.hbm [resolvable:$true] %s54
      %s56 = sshll.u32 [#allocation5], 4
      %s57 = int_to_ptr.vmem [resolvable:$true] %s56
      %62 = dma.hbm_to_vmem [thread:$0]  %s55, 256, %s57, [#allocation6], 128, 128, 8
    $region21: #{_bert_forward.1} parent=1 // pred_fallthru
      _
    // Predicated region
    $region22: #{_bert_forward.1} parent=1 // pred_check
      _
    $region23: #{_bert_forward.1} parent=1 // pred_check_branch
      %64 = sbr.rel (0) target = $region25
    $region24: #{_bert_forward.1} parent=1 // pred_region
      _
    $region25: #{_bert_forward.1} parent=1 // pred_fallthru
      _
    // Predicated region
    $region26: #{_bert_forward.1} parent=1 // pred_check
      _
    $region27: #{_bert_forward.1} parent=1 // pred_check_branch
      %66 = sbr.rel (0) target = $region29
    $region28: #{_bert_forward.1} parent=1 // pred_region
      %68 = vsyncadd [#allocation6], 0
      %s69 = sshll.u32 %s6, 4
      %s70 = int_to_ptr.hbm [resolvable:$true] %s69
      %s71 = sshll.u32 [#allocation7], 4
      %s72 = int_to_ptr.vmem [resolvable:$true] %s71
      %77 = dma.hbm_to_vmem [thread:$0]  %s70, 32, %s72, [#allocation6], 16, 16, 1
    $region29: #{_bert_forward.1} parent=1 // pred_fallthru
      _
    // Predicated region
    $region30: #{_bert_forward.1} parent=1 // pred_check
      _
    $region31: #{_bert_forward.1} parent=1 // pred_check_branch
      %79 = sbr.rel (0) target = $region33
    $region32: #{_bert_forward.1} parent=1 // pred_region
      _
    $region33: #{_bert_forward.1} parent=1 // pred_fallthru
      _
    // Predicated region
    $region34: #{_bert_forward.1} parent=1 // pred_check
      _
    $region35: #{_bert_forward.1} parent=1 // pred_check_branch
      %81 = sbr.rel (0) target = $region37
    $region36: #{_bert_forward.1} parent=1 // pred_region
      %83 = vsyncadd [#allocation9], 0
      %s84 = sshll.u32 %s8, 4
      %s85 = int_to_ptr.hbm [resolvable:$true] %s84
      %s86 = sshll.u32 [#allocation8], 4
      %s87 = int_to_ptr.vmem [resolvable:$true] %s86
      %92 = dma.hbm_to_vmem [thread:$0]  %s85, 32, %s87, [#allocation9], 16, 16, 1
    $region37: #{_bert_forward.1} parent=1 // pred_fallthru
      _
    // Predicated region
    $region38: #{_bert_forward.1} parent=1 // pred_check
      _
    $region39: #{_bert_forward.1} parent=1 // pred_check_branch
      %94 = sbr.rel (0) target = $region41
    $region40: #{_bert_forward.1} parent=1 // pred_region
      %96 = vsyncadd [#allocation9], 0
      %s97 = sshll.u32 %s9, 4
      %s98 = int_to_ptr.hbm [resolvable:$true] %s97
      %s99 = sshll.u32 [#allocation10], 4
      %s100 = int_to_ptr.vmem [resolvable:$true] %s99
      %105 = dma.hbm_to_vmem [thread:$0]  %s98, 32, %s100, [#allocation9], 16, 16, 1
    $region41: #{_bert_forward.1} parent=1 // pred_fallthru
      _
    // Predicated region
    $region42: #{_bert_forward.1} parent=1 // pred_check
      _
    $region43: #{_bert_forward.1} parent=1 // pred_check_branch
      %107 = sbr.rel (0) target = $region45
    $region44: #{_bert_forward.1} parent=1 // pred_region
      %109 = vsyncadd [#allocation12], 0
      %s110 = sshll.u32 %s10, 4
      %s111 = int_to_ptr.hbm [resolvable:$true] %s110
      %s112 = sshll.u32 [#allocation11], 4
      %s113 = int_to_ptr.vmem [resolvable:$true] %s112
      %118 = dma.hbm_to_vmem [thread:$0]  %s111, 32, %s113, [#allocation12], 16, 16, 1
    $region45: #{_bert_forward.1} parent=1 // pred_fallthru
      _
    // Predicated region
    $region46: #{_bert_forward.1} parent=1 // pred_check
      _
    $region47: #{_bert_forward.1} parent=1 // pred_check_branch
      %120 = sbr.rel (0) target = $region49
    $region48: #{_bert_forward.1} parent=1 // pred_region
      _
    $region49: #{_bert_forward.1} parent=1 // pred_fallthru
      _
    // Predicated region
    $region50: #{_bert_forward.1} parent=1 // pred_check
      _
    $region51: #{_bert_forward.1} parent=1 // pred_check_branch
      %122 = sbr.rel (0) target = $region53
    $region52: #{_bert_forward.1} parent=1 // pred_region
      %124 = vsyncadd [#allocation12], 0
      %s125 = sshll.u32 %s12, 4
      %s126 = int_to_ptr.hbm [resolvable:$true] %s125
      %s127 = sshll.u32 [#allocation13], 4
      %s128 = int_to_ptr.vmem [resolvable:$true] %s127
      %133 = dma.hbm_to_vmem [thread:$0]  %s126, 32, %s128, [#allocation12], 16, 16, 1
    $region53: #{_bert_forward.1} parent=1 // pred_fallthru
      _
    // Predicated region
    $region54: #{_bert_forward.1} parent=1 // pred_check
      _
    $region55: #{_bert_forward.1} parent=1 // pred_check_branch
      %135 = sbr.rel (0) target = $region57
    $region56: #{_bert_forward.1} parent=1 // pred_region
      _
    $region57: #{_bert_forward.1} parent=1 // pred_fallthru
      _
    // Predicated region
    $region58: #{_bert_forward.1} parent=1 // pred_check
      _
    $region59: #{_bert_forward.1} parent=1 // pred_check_branch
      %137 = sbr.rel (0) target = $region61
    $region60: #{_bert_forward.1} parent=1 // pred_region
      %139 = vsyncadd [#allocation15], 0
      %s140 = sshll.u32 %s14, 4
      %s141 = int_to_ptr.hbm [resolvable:$true] %s140
      %s142 = sshll.u32 [#allocation14], 4
      %s143 = int_to_ptr.vmem [resolvable:$true] %s142
      %148 = dma.hbm_to_vmem [thread:$0]  %s141, 32, %s143, [#allocation15], 16, 16, 1
    $region61: #{_bert_forward.1} parent=1 // pred_fallthru
      _
    // Predicated region
    $region62: #{_bert_forward.1} parent=1 // pred_check
      _
    $region63: #{_bert_forward.1} parent=1 // pred_check_branch
      %150 = sbr.rel (0) target = $region65
    $region64: #{_bert_forward.1} parent=1 // pred_region
      %152 = vsyncadd [#allocation15], 0
      %s153 = sshll.u32 %s15, 4
      %s154 = int_to_ptr.hbm [resolvable:$true] %s153
      %s155 = sshll.u32 [#allocation16], 4
      %s156 = int_to_ptr.vmem [resolvable:$true] %s155
      %161 = dma.hbm_to_vmem [thread:$0]  %s154, 32, %s156, [#allocation15], 16, 16, 1
    $region65: #{_bert_forward.1} parent=1 // pred_fallthru
      _
    // Predicated region
    $region66: #{_bert_forward.1} parent=1 // pred_check
      _
    $region67: #{_bert_forward.1} parent=1 // pred_check_branch
      %163 = sbr.rel (0) target = $region69
    $region68: #{_bert_forward.1} parent=1 // pred_region
      %165 = vsyncadd [#allocation18], 0
      %s166 = sshll.u32 %s16, 4
      %s167 = int_to_ptr.hbm [resolvable:$true] %s166
      %s168 = sshll.u32 [#allocation17], 4
      %s169 = int_to_ptr.vmem [resolvable:$true] %s168
      %174 = dma.hbm_to_vmem [thread:$0]  %s167, 32, %s169, [#allocation18], 16, 16, 1
    $region69: #{_bert_forward.1} parent=1 // pred_fallthru
      _
    // Predicated region
    $region70: #{_bert_forward.1} parent=1 // pred_check
      _
    $region71: #{_bert_forward.1} parent=1 // pred_check_branch
      %176 = sbr.rel (0) target = $region73
    $region72: #{_bert_forward.1} parent=1 // pred_region
      _
    $region73: #{_bert_forward.1} parent=1 // pred_fallthru
      _
    // Predicated region
    $region74: #{_bert_forward.1} parent=1 // pred_check
      _
    $region75: #{_bert_forward.1} parent=1 // pred_check_branch
      %178 = sbr.rel (0) target = $region77
    $region76: #{_bert_forward.1} parent=1 // pred_region
      %180 = vsyncadd [#allocation18], 0
      %s182 = sshll.u32 %s18, 4
      %s183 = int_to_ptr.hbm [resolvable:$true] %s182
      %s184 = sshll.u32 [#allocation19], 4
      %s185 = int_to_ptr.vmem [resolvable:$true] %s184
      %187 = dma.hbm_to_vmem [thread:$0]  %s183, 16, %s185, [#allocation18]
    $region77: #{_bert_forward.1} parent=1 // pred_fallthru
      _
    // Predicated region
    $region78: #{_bert_forward.1} parent=1 // pred_check
      _
    $region79: #{_bert_forward.1} parent=1 // pred_check_branch
      %189 = sbr.rel (0) target = $region81
    $region80: #{_bert_forward.1} parent=1 // pred_region
      %191 = dma.done [#allocation3], 256
    $region81: #{_bert_forward.1} parent=1 // pred_fallthru
      _
    // Predicated region
    $region82: #{_bert_forward.1} parent=1 // pred_check
      _
    $region83: #{_bert_forward.1} parent=1 // pred_check_branch
      %193 = sbr.rel (0) target = $region85
    $region84: #{_bert_forward.1} parent=1 // pred_region
      %195 = dma.done [#allocation6], 256
    $region85: #{_bert_forward.1} parent=1 // pred_fallthru
      _
    // Predicated region
    $region86: #{_bert_forward.1} parent=1 // pred_check
      _
    $region87: #{_bert_forward.1} parent=1 // pred_check_branch
      %197 = sbr.rel (0) target = $region89
    $region88: #{_bert_forward.1} parent=1 // pred_region
      %199 = dma.done [#allocation6], 32
    $region89: #{_bert_forward.1} parent=1 // pred_fallthru
      _
    // Predicated region
    $region90: #{_bert_forward.1} parent=1 // pred_check
      _
    $region91: #{_bert_forward.1} parent=1 // pred_check_branch
      %201 = sbr.rel (0) target = $region93
    $region92: #{_bert_forward.1} parent=1 // pred_region
      %203 = dma.done [#allocation9], 32
    $region93: #{_bert_forward.1} parent=1 // pred_fallthru
      _
    // Predicated region
    $region94: #{_bert_forward.1} parent=1 // pred_check
      _
    $region95: #{_bert_forward.1} parent=1 // pred_check_branch
      %205 = sbr.rel (0) target = $region97
    $region96: #{_bert_forward.1} parent=1 // pred_region
      %207 = dma.done [#allocation9], 32
    $region97: #{_bert_forward.1} parent=1 // pred_fallthru
      _
    // Predicated region
    $region98: #{_bert_forward.1} parent=1 // pred_check
      _
    $region99: #{_bert_forward.1} parent=1 // pred_check_branch
      %209 = sbr.rel (0) target = $region101
    $region100: #{_bert_forward.1} parent=1 // pred_region
      %211 = dma.done [#allocation12], 32
    $region101: #{_bert_forward.1} parent=1 // pred_fallthru
      _
    // Predicated region
    $region102: #{_bert_forward.1} parent=1 // pred_check
      _
    $region103: #{_bert_forward.1} parent=1 // pred_check_branch
      %213 = sbr.rel (0) target = $region105
    $region104: #{_bert_forward.1} parent=1 // pred_region
      %215 = dma.done [#allocation12], 32
    $region105: #{_bert_forward.1} parent=1 // pred_fallthru
      _
    // Predicated region
    $region106: #{_bert_forward.1} parent=1 // pred_check
      _
    $region107: #{_bert_forward.1} parent=1 // pred_check_branch
      %217 = sbr.rel (0) target = $region109
    $region108: #{_bert_forward.1} parent=1 // pred_region
      %219 = dma.done [#allocation15], 32
    $region109: #{_bert_forward.1} parent=1 // pred_fallthru
      _
    // Predicated region
    $region110: #{_bert_forward.1} parent=1 // pred_check
      _
    $region111: #{_bert_forward.1} parent=1 // pred_check_branch
      %221 = sbr.rel (0) target = $region113
    $region112: #{_bert_forward.1} parent=1 // pred_region
      %223 = dma.done [#allocation15], 32
    $region113: #{_bert_forward.1} parent=1 // pred_fallthru
      _
    // Predicated region
    $region114: #{_bert_forward.1} parent=1 // pred_check
      _
    $region115: #{_bert_forward.1} parent=1 // pred_check_branch
      %225 = sbr.rel (0) target = $region117
    $region116: #{_bert_forward.1} parent=1 // pred_region
      %227 = dma.done [#allocation18], 32
    $region117: #{_bert_forward.1} parent=1 // pred_fallthru
      _
    // Predicated region
    $region118: #{_bert_forward.1} parent=1 // pred_check
      _
    $region119: #{_bert_forward.1} parent=1 // pred_check_branch
      %229 = sbr.rel (0) target = $region121
    $region120: #{_bert_forward.1} parent=1 // pred_region
      %231 = dma.done [#allocation18], 16
    $region121: #{_bert_forward.1} parent=1 // pred_fallthru
      _
    %v232 = vld [vmem:[%s0] sm:$0xff]
    %v233 = vld [vmem:[%s0 + $0x8] sm:$0xff]
    %v234 = vld [vmem:[%s1] sm:$0x1]
    %v235 = vld [vmem:[#allocation2] sm:$0xff]
    %v236 = vld [vmem:[#allocation2 + $0x8] sm:$0xff]
    %v237 = vlaneseq
    %v238 = vand.u32 %v237, 127
    %239 = vset.pattern.permute.xlu0 0
    %240 = vperm.xlu0 %239, %v232
    %v241 = vpop.permute.xlu0 %240
    %242 = vset.pattern.permute.xlu0 0
    %243 = vperm.xlu0 %242, %v233
    %v244 = vpop.permute.xlu0 %243
    %vm245 = vcmp.eq.s32.totalorder %v238, %v241
    %vm246 = vcmp.eq.s32.totalorder %v238, %v244
    %v247 = vsel %vm245, 1, 0
    %v248 = vsel %vm246, 1, 0
    %v249 = vcvt.s32.f32 %v247
    %v250 = vcvt.s32.f32 %v248
    %v251 = vld [vmem:[%s3] sm:$0xff]
    %v252 = vld [vmem:[%s3 + $0x8] sm:$0xff]
    %v253 = vld [vmem:[%s3 + $0x10] sm:$0xff]
    %v254 = vld [vmem:[%s3 + $0x18] sm:$0xff]
    %v255 = vld [vmem:[%s3 + $0x20] sm:$0xff]
    %v256 = vld [vmem:[%s3 + $0x28] sm:$0xff]
    %v257 = vld [vmem:[%s3 + $0x30] sm:$0xff]
    %v258 = vld [vmem:[%s3 + $0x38] sm:$0xff]
    %v259 = vld [vmem:[#allocation5] sm:$0xff]
    %v260 = vld [vmem:[#allocation5 + $0x8] sm:$0xff]
    %vm261 = vcmask 523264
    %v263 = vsel %vm261, %v249, 0
    %v266 = vsel %vm261, %v250, 0
    %268 = vmatpush.msra.mxu0 0.0
    %269 = vmatpush.msra.mxu0 0.0
    %270 = vmatpush.msra.mxu0 0.0
    %271 = vmatpush.msra.mxu0 0.0
    %272 = vmatpush.msra.mxu0 0.0
    %273 = vmatpush.msra.mxu0 0.0
    %274 = vmatpush.msra.mxu0 0.0
    %275 = vmatpush.msra.mxu0 0.0
    %276 = vmatpush.msra.mxu0 %v258
    %277 = vmatpush.msra.mxu0 %v257
    %278 = vmatpush.msra.mxu0 %v256
    %279 = vmatpush.msra.mxu0 %v255
    %280 = vmatpush.msra.mxu0 %v254
    %281 = vmatpush.msra.mxu0 %v253
    %282 = vmatpush.msra.mxu0 %v252
    %283 = vmatpush.msra.mxu0 %v251
    %284 = vmatmul.f32.gmra.mxu0 %v263
    %v285 = vpop.f32.mrf.mxu0
    %v286 = vadd.f32 %v259, %v285
    %287 = vmatmul.f32.gmra.mxu0 %v266
    %v288 = vpop.f32.mrf.mxu0
    %v289 = vadd.f32 %v260, %v288
    %290 = vdwg.mxu0
    %vm291 = vcmp.eq.f32.partialorder %v235, 0.0
    %vm292 = vcmp.eq.f32.partialorder %v236, 0.0
    %vm293 = vcmp.ne.s32.totalorder %v232, 0
    %vm294 = vcmp.ne.s32.totalorder %v233, 0
    %vm295 = vcmp.ne.s32.totalorder %v234, 0
    %v296 = vsel %vm293, 1, 0
    %v297 = vsel %vm294, 1, 0
    %298 = vset.pattern.permute.xlu0 0
    %299 = vperm.xlu0 %298, %v296
    %v300 = vpop.permute.xlu0 %299
    %301 = vset.pattern.permute.xlu0 0
    %302 = vperm.xlu0 %301, %v297
    %v303 = vpop.permute.xlu0 %302
    %vm304 = vcmp.eq.s32.totalorder %v300, 1
    %vm305 = vcmp.eq.s32.totalorder %v303, 1
    %v306 = vsel %vm295, 1, 0
    %v307 = vperm.slane %v306, 0
    %vm308 = vcmp.eq.s32.totalorder %v307, 1
    %vm309 = vmand %vm304, %vm308
    %vm310 = vmand %vm305, %vm308
    %vm311 = vmand %vm309, %vm291
    %vm312 = vmand %vm310, %vm292
    %v313 = vsel %vm311, 0.0, -1e+09
    %v314 = vsel %vm312, 0.0, -1e+09
    %v315 = vadd.f32 %v313, %v235
    %v316 = vadd.f32 %v314, %v236
    %v317 = vld [vmem:[%s5] sm:$0xff]
    %v318 = vld [vmem:[%s5 + $0x8] sm:$0xff]
    %v319 = vld [vmem:[%s5 + $0x10] sm:$0xff]
    %v320 = vld [vmem:[%s5 + $0x18] sm:$0xff]
    %v321 = vld [vmem:[#allocation7] sm:$0x1]
    %v323 = vperm.slane %v321, 0
    %vm325 = vcmask 261120
    %v327 = vsel %vm325, %v286, 0
    %v330 = vsel %vm325, %v289, 0
    %332 = vmatpush.msra.mxu0 0.0
    %333 = vmatpush.msra.mxu0 0.0
    %334 = vmatpush.msra.mxu0 0.0
    %335 = vmatpush.msra.mxu0 0.0
    %336 = vmatpush.msra.mxu0 0.0
    %337 = vmatpush.msra.mxu0 0.0
    %338 = vmatpush.msra.mxu0 0.0
    %339 = vmatpush.msra.mxu0 0.0
    %340 = vmatpush.msra.mxu0 0.0
    %341 = vmatpush.msra.mxu0 0.0
    %342 = vmatpush.msra.mxu0 0.0
    %343 = vmatpush.msra.mxu0 0.0
    %344 = vmatpush.msra.mxu0 %v320
    %345 = vmatpush.msra.mxu0 %v319
    %346 = vmatpush.msra.mxu0 %v318
    %347 = vmatpush.msra.mxu0 %v317
    %348 = vmatmul.f32.gmra.mxu0 %v327
    %v349 = vpop.f32.mrf.mxu0
    %v350 = vadd.f32 %v323, %v349
    %351 = vmatmul.f32.gmra.mxu0 %v330
    %v352 = vpop.f32.mrf.mxu0
    %v353 = vadd.f32 %v323, %v352
    %354 = vdwg.mxu0
    %v355 = vld [vmem:[%s7] sm:$0xff]
    %v356 = vld [vmem:[%s7 + $0x8] sm:$0xff]
    %v357 = vld [vmem:[%s7 + $0x10] sm:$0xff]
    %v358 = vld [vmem:[%s7 + $0x18] sm:$0xff]
    %361 = vrot.lane.b32.xlu0 %v350, 96
    %v362 = vpop.permute.xlu0 %361
    %363 = vrot.lane.b32.xlu0 %v353, 96
    %v364 = vpop.permute.xlu0 %363
    %vm365 = vcmask 64512
    %v366 = vsel %vm365, %v350, 0
    %v368 = vsel %vm365, %v353, 0
    %v370 = vsel %vm365, %v362, 0
    %v372 = vsel %vm365, %v364, 0
    %374 = vmatpush.xpose.msra.mxu0 0.0
    %375 = vmatpush.xpose.msra.mxu0 0.0
    %376 = vmatpush.xpose.msra.mxu0 0.0
    %377 = vmatpush.xpose.msra.mxu0 0.0
    %378 = vmatpush.xpose.msra.mxu0 0.0
    %379 = vmatpush.xpose.msra.mxu0 0.0
    %380 = vmatpush.xpose.msra.mxu0 0.0
    %381 = vmatpush.xpose.msra.mxu0 0.0
    %382 = vmatpush.xpose.msra.mxu0 0.0
    %383 = vmatpush.xpose.msra.mxu0 0.0
    %384 = vmatpush.xpose.msra.mxu0 0.0
    %385 = vmatpush.xpose.msra.mxu0 0.0
    %386 = vmatpush.xpose.msra.mxu0 0.0
    %387 = vmatpush.xpose.msra.mxu0 0.0
    %388 = vmatpush.xpose.msra.mxu0 %v372
    %389 = vmatpush.xpose.msra.mxu0 %v370
    %390 = vmatmul.f32.gmra.mxu0 %v366
    %v391 = vpop.f32.mrf.mxu0
    %v392 = vadd.f32 0.0, %v391
    %393 = vmatmul.f32.gmra.mxu0 %v368
    %v394 = vpop.f32.mrf.mxu0
    %v395 = vadd.f32 0.0, %v394
    %396 = vdwg.mxu0
    %v397 = vmul.f32 %v392, 0.35355338
    %v398 = vmul.f32 %v395, 0.35355338
    %v399 = vadd.f32 %v397, %v315
    %v400 = vadd.f32 %v398, %v316
    %vm401 = vcmask 130048
    %v402 = vsel %vm401, %v399, -inf
    %403 = vmax.xlane.f32.xlu0 %v402
    %v404 = vpop.xlane.xlu0 %403
    %v405 = vsel %vm401, %v400, -inf
    %406 = vmax.xlane.f32.xlu0 %v405
    %v407 = vpop.xlane.xlu0 %406
    %v408 = vsub.f32 %v399, %v404
    %v409 = vsub.f32 %v400, %v407
    %v410 = vmul.f32 %v408, 1.442695
    %v411 = vpow.pop %v410
    %v412 = vmul.f32 %v409, 1.442695
    %v413 = vpow.pop %v412
    %v414 = vsel %vm401, %v411, 0.0
    %415 = vadd.xlane.f32.xlu0 %v414
    %v416 = vpop.xlane.xlu0 %415
    %v417 = vsel %vm401, %v413, 0.0
    %418 = vadd.xlane.f32.xlu0 %v417
    %v419 = vpop.xlane.xlu0 %418
    %v420 = vrcp.pop %v416
    %v421 = vrcp.pop %v419
    %v422 = vmul.f32 %v411, %v420
    %v423 = vmul.f32 %v413, %v421
    %424 = vrot.lane.b32.xlu0 %v350, 64
    %v425 = vpop.permute.xlu0 %424
    %426 = vrot.lane.b32.xlu0 %v353, 64
    %v427 = vpop.permute.xlu0 %426
    %v431 = vsel %vm401, %v422, 0
    %v434 = vsel %vm401, %v423, 0
    %436 = vmatpush.msra.mxu0 0.0
    %437 = vmatpush.msra.mxu0 0.0
    %438 = vmatpush.msra.mxu0 0.0
    %439 = vmatpush.msra.mxu0 0.0
    %440 = vmatpush.msra.mxu0 0.0
    %441 = vmatpush.msra.mxu0 0.0
    %442 = vmatpush.msra.mxu0 0.0
    %443 = vmatpush.msra.mxu0 0.0
    %444 = vmatpush.msra.mxu0 0.0
    %445 = vmatpush.msra.mxu0 0.0
    %446 = vmatpush.msra.mxu0 0.0
    %447 = vmatpush.msra.mxu0 0.0
    %448 = vmatpush.msra.mxu0 0.0
    %449 = vmatpush.msra.mxu0 0.0
    %450 = vmatpush.msra.mxu0 %v427
    %451 = vmatpush.msra.mxu0 %v425
    %452 = vmatmul.f32.gmra.mxu0 %v431
    %v453 = vpop.f32.mrf.mxu0
    %v454 = vadd.f32 0.0, %v453
    %455 = vmatmul.f32.gmra.mxu0 %v434
    %v456 = vpop.f32.mrf.mxu0
    %v457 = vadd.f32 0.0, %v456
    %458 = vdwg.mxu0
    %459 = vrot.lane.b32.xlu0 %v350, 120
    %v460 = vpop.permute.xlu0 %459
    %461 = vrot.lane.b32.xlu0 %v353, 120
    %v462 = vpop.permute.xlu0 %461
    %463 = vrot.lane.b32.xlu0 %v350, 88
    %v464 = vpop.permute.xlu0 %463
    %465 = vrot.lane.b32.xlu0 %v353, 88
    %v466 = vpop.permute.xlu0 %465
    %v467 = vsel %vm365, %v460, 0
    %v469 = vsel %vm365, %v462, 0
    %v471 = vsel %vm365, %v464, 0
    %v473 = vsel %vm365, %v466, 0
    %475 = vmatpush.xpose.msra.mxu0 0.0
    %476 = vmatpush.xpose.msra.mxu0 0.0
    %477 = vmatpush.xpose.msra.mxu0 0.0
    %478 = vmatpush.xpose.msra.mxu0 0.0
    %479 = vmatpush.xpose.msra.mxu0 0.0
    %480 = vmatpush.xpose.msra.mxu0 0.0
    %481 = vmatpush.xpose.msra.mxu0 0.0
    %482 = vmatpush.xpose.msra.mxu0 0.0
    %483 = vmatpush.xpose.msra.mxu0 0.0
    %484 = vmatpush.xpose.msra.mxu0 0.0
    %485 = vmatpush.xpose.msra.mxu0 0.0
    %486 = vmatpush.xpose.msra.mxu0 0.0
    %487 = vmatpush.xpose.msra.mxu0 0.0
    %488 = vmatpush.xpose.msra.mxu0 0.0
    %489 = vmatpush.xpose.msra.mxu0 %v473
    %490 = vmatpush.xpose.msra.mxu0 %v471
    %491 = vmatmul.f32.gmra.mxu0 %v467
    %v492 = vpop.f32.mrf.mxu0
    %v493 = vadd.f32 0.0, %v492
    %494 = vmatmul.f32.gmra.mxu0 %v469
    %v495 = vpop.f32.mrf.mxu0
    %v496 = vadd.f32 0.0, %v495
    %497 = vdwg.mxu0
    %v498 = vmul.f32 %v493, 0.35355338
    %v499 = vmul.f32 %v496, 0.35355338
    %v500 = vadd.f32 %v498, %v315
    %v501 = vadd.f32 %v499, %v316
    %v502 = vsel %vm401, %v500, -inf
    %503 = vmax.xlane.f32.xlu0 %v502
    %v504 = vpop.xlane.xlu0 %503
    %v505 = vsel %vm401, %v501, -inf
    %506 = vmax.xlane.f32.xlu0 %v505
    %v507 = vpop.xlane.xlu0 %506
    %v508 = vsub.f32 %v500, %v504
    %v509 = vsub.f32 %v501, %v507
    %v510 = vmul.f32 %v508, 1.442695
    %v511 = vpow.pop %v510
    %v512 = vmul.f32 %v509, 1.442695
    %v513 = vpow.pop %v512
    %v514 = vsel %vm401, %v511, 0.0
    %515 = vadd.xlane.f32.xlu0 %v514
    %v516 = vpop.xlane.xlu0 %515
    %v517 = vsel %vm401, %v513, 0.0
    %518 = vadd.xlane.f32.xlu0 %v517
    %v519 = vpop.xlane.xlu0 %518
    %v520 = vrcp.pop %v516
    %v521 = vrcp.pop %v519
    %v522 = vmul.f32 %v511, %v520
    %v523 = vmul.f32 %v513, %v521
    %524 = vrot.lane.b32.xlu0 %v350, 56
    %v525 = vpop.permute.xlu0 %524
    %526 = vrot.lane.b32.xlu0 %v353, 56
    %v527 = vpop.permute.xlu0 %526
    %v531 = vsel %vm401, %v522, 0
    %v534 = vsel %vm401, %v523, 0
    %536 = vmatpush.msra.mxu0 0.0
    %537 = vmatpush.msra.mxu0 0.0
    %538 = vmatpush.msra.mxu0 0.0
    %539 = vmatpush.msra.mxu0 0.0
    %540 = vmatpush.msra.mxu0 0.0
    %541 = vmatpush.msra.mxu0 0.0
    %542 = vmatpush.msra.mxu0 0.0
    %543 = vmatpush.msra.mxu0 0.0
    %544 = vmatpush.msra.mxu0 0.0
    %545 = vmatpush.msra.mxu0 0.0
    %546 = vmatpush.msra.mxu0 0.0
    %547 = vmatpush.msra.mxu0 0.0
    %548 = vmatpush.msra.mxu0 0.0
    %549 = vmatpush.msra.mxu0 0.0
    %550 = vmatpush.msra.mxu0 %v527
    %551 = vmatpush.msra.mxu0 %v525
    %552 = vmatmul.f32.gmra.mxu0 %v531
    %v553 = vpop.f32.mrf.mxu0
    %v554 = vadd.f32 0.0, %v553
    %555 = vmatmul.f32.gmra.mxu0 %v534
    %v556 = vpop.f32.mrf.mxu0
    %v557 = vadd.f32 0.0, %v556
    %558 = vdwg.mxu0
    %v560 = vsel %vm365, %v554, 0
    %v563 = vsel %vm365, %v557, 0
    %565 = vmatpush.msra.mxu0 0.0
    %566 = vmatpush.msra.mxu0 0.0
    %567 = vmatpush.msra.mxu0 0.0
    %568 = vmatpush.msra.mxu0 0.0
    %569 = vmatpush.msra.mxu0 0.0
    %570 = vmatpush.msra.mxu0 0.0
    %571 = vmatpush.msra.mxu0 0.0
    %572 = vmatpush.msra.mxu0 0.0
    %573 = vmatpush.msra.mxu0 0.0
    %574 = vmatpush.msra.mxu0 0.0
    %575 = vmatpush.msra.mxu0 0.0
    %576 = vmatpush.msra.mxu0 0.0
    %577 = vmatpush.msra.mxu0 0.0
    %578 = vmatpush.msra.mxu0 0.0
    %579 = vmatpush.msra.mxu0 0.0
    %580 = vmatpush.msra.mxu0 %v356
    %581 = vmatmul.f32.gmra.mxu0 %v560
    %v582 = vpop.f32.mrf.mxu0
    %v583 = vadd.f32 0.0, %v582
    %584 = vmatmul.f32.gmra.mxu0 %v563
    %v585 = vpop.f32.mrf.mxu0
    %v586 = vadd.f32 0.0, %v585
    %587 = vdwg.mxu0
    %v589 = vsel %vm365, %v454, 0
    %v592 = vsel %vm365, %v457, 0
    %594 = vmatpush.msra.mxu0 0.0
    %595 = vmatpush.msra.mxu0 0.0
    %596 = vmatpush.msra.mxu0 0.0
    %597 = vmatpush.msra.mxu0 0.0
    %598 = vmatpush.msra.mxu0 0.0
    %599 = vmatpush.msra.mxu0 0.0
    %600 = vmatpush.msra.mxu0 0.0
    %601 = vmatpush.msra.mxu0 0.0
    %602 = vmatpush.msra.mxu0 0.0
    %603 = vmatpush.msra.mxu0 0.0
    %604 = vmatpush.msra.mxu0 0.0
    %605 = vmatpush.msra.mxu0 0.0
    %606 = vmatpush.msra.mxu0 0.0
    %607 = vmatpush.msra.mxu0 0.0
    %608 = vmatpush.msra.mxu0 0.0
    %609 = vmatpush.msra.mxu0 %v355
    %610 = vmatmul.f32.gmra.mxu0 %v589
    %v611 = vpop.f32.mrf.mxu0
    %v612 = vadd.f32 %v583, %v611
    %613 = vmatmul.f32.gmra.mxu0 %v592
    %v614 = vpop.f32.mrf.mxu0
    %v615 = vadd.f32 %v586, %v614
    %616 = vdwg.mxu0
    %617 = vrot.lane.b32.xlu0 %v350, 112
    %v618 = vpop.permute.xlu0 %617
    %619 = vrot.lane.b32.xlu0 %v353, 112
    %v620 = vpop.permute.xlu0 %619
    %621 = vrot.lane.b32.xlu0 %v350, 80
    %v622 = vpop.permute.xlu0 %621
    %623 = vrot.lane.b32.xlu0 %v353, 80
    %v624 = vpop.permute.xlu0 %623
    %v625 = vsel %vm365, %v618, 0
    %v627 = vsel %vm365, %v620, 0
    %v629 = vsel %vm365, %v622, 0
    %v631 = vsel %vm365, %v624, 0
    %633 = vmatpush.xpose.msra.mxu0 0.0
    %634 = vmatpush.xpose.msra.mxu0 0.0
    %635 = vmatpush.xpose.msra.mxu0 0.0
    %636 = vmatpush.xpose.msra.mxu0 0.0
    %637 = vmatpush.xpose.msra.mxu0 0.0
    %638 = vmatpush.xpose.msra.mxu0 0.0
    %639 = vmatpush.xpose.msra.mxu0 0.0
    %640 = vmatpush.xpose.msra.mxu0 0.0
    %641 = vmatpush.xpose.msra.mxu0 0.0
    %642 = vmatpush.xpose.msra.mxu0 0.0
    %643 = vmatpush.xpose.msra.mxu0 0.0
    %644 = vmatpush.xpose.msra.mxu0 0.0
    %645 = vmatpush.xpose.msra.mxu0 0.0
    %646 = vmatpush.xpose.msra.mxu0 0.0
    %647 = vmatpush.xpose.msra.mxu0 %v631
    %648 = vmatpush.xpose.msra.mxu0 %v629
    %649 = vmatmul.f32.gmra.mxu0 %v625
    %v650 = vpop.f32.mrf.mxu0
    %v651 = vadd.f32 0.0, %v650
    %652 = vmatmul.f32.gmra.mxu0 %v627
    %v653 = vpop.f32.mrf.mxu0
    %v654 = vadd.f32 0.0, %v653
    %655 = vdwg.mxu0
    %v656 = vmul.f32 %v651, 0.35355338
    %v657 = vmul.f32 %v654, 0.35355338
    %v658 = vadd.f32 %v656, %v315
    %v659 = vadd.f32 %v657, %v316
    %v660 = vsel %vm401, %v658, -inf
    %661 = vmax.xlane.f32.xlu0 %v660
    %v662 = vpop.xlane.xlu0 %661
    %v663 = vsel %vm401, %v659, -inf
    %664 = vmax.xlane.f32.xlu0 %v663
    %v665 = vpop.xlane.xlu0 %664
    %v666 = vsub.f32 %v658, %v662
    %v667 = vsub.f32 %v659, %v665
    %v668 = vmul.f32 %v666, 1.442695
    %v669 = vpow.pop %v668
    %v670 = vmul.f32 %v667, 1.442695
    %v671 = vpow.pop %v670
    %v672 = vsel %vm401, %v669, 0.0
    %673 = vadd.xlane.f32.xlu0 %v672
    %v674 = vpop.xlane.xlu0 %673
    %v675 = vsel %vm401, %v671, 0.0
    %676 = vadd.xlane.f32.xlu0 %v675
    %v677 = vpop.xlane.xlu0 %676
    %v678 = vrcp.pop %v674
    %v679 = vrcp.pop %v677
    %v680 = vmul.f32 %v669, %v678
    %v681 = vmul.f32 %v671, %v679
    %682 = vrot.lane.b32.xlu0 %v350, 48
    %v683 = vpop.permute.xlu0 %682
    %684 = vrot.lane.b32.xlu0 %v353, 48
    %v685 = vpop.permute.xlu0 %684
    %v689 = vsel %vm401, %v680, 0
    %v692 = vsel %vm401, %v681, 0
    %694 = vmatpush.msra.mxu0 0.0
    %695 = vmatpush.msra.mxu0 0.0
    %696 = vmatpush.msra.mxu0 0.0
    %697 = vmatpush.msra.mxu0 0.0
    %698 = vmatpush.msra.mxu0 0.0
    %699 = vmatpush.msra.mxu0 0.0
    %700 = vmatpush.msra.mxu0 0.0
    %701 = vmatpush.msra.mxu0 0.0
    %702 = vmatpush.msra.mxu0 0.0
    %703 = vmatpush.msra.mxu0 0.0
    %704 = vmatpush.msra.mxu0 0.0
    %705 = vmatpush.msra.mxu0 0.0
    %706 = vmatpush.msra.mxu0 0.0
    %707 = vmatpush.msra.mxu0 0.0
    %708 = vmatpush.msra.mxu0 %v685
    %709 = vmatpush.msra.mxu0 %v683
    %710 = vmatmul.f32.gmra.mxu0 %v689
    %v711 = vpop.f32.mrf.mxu0
    %v712 = vadd.f32 0.0, %v711
    %713 = vmatmul.f32.gmra.mxu0 %v692
    %v714 = vpop.f32.mrf.mxu0
    %v715 = vadd.f32 0.0, %v714
    %716 = vdwg.mxu0
    %v718 = vsel %vm365, %v712, 0
    %v721 = vsel %vm365, %v715, 0
    %723 = vmatpush.msra.mxu0 0.0
    %724 = vmatpush.msra.mxu0 0.0
    %725 = vmatpush.msra.mxu0 0.0
    %726 = vmatpush.msra.mxu0 0.0
    %727 = vmatpush.msra.mxu0 0.0
    %728 = vmatpush.msra.mxu0 0.0
    %729 = vmatpush.msra.mxu0 0.0
    %730 = vmatpush.msra.mxu0 0.0
    %731 = vmatpush.msra.mxu0 0.0
    %732 = vmatpush.msra.mxu0 0.0
    %733 = vmatpush.msra.mxu0 0.0
    %734 = vmatpush.msra.mxu0 0.0
    %735 = vmatpush.msra.mxu0 0.0
    %736 = vmatpush.msra.mxu0 0.0
    %737 = vmatpush.msra.mxu0 0.0
    %738 = vmatpush.msra.mxu0 %v357
    %739 = vmatmul.f32.gmra.mxu0 %v718
    %v740 = vpop.f32.mrf.mxu0
    %v741 = vadd.f32 0.0, %v740
    %742 = vmatmul.f32.gmra.mxu0 %v721
    %v743 = vpop.f32.mrf.mxu0
    %v744 = vadd.f32 0.0, %v743
    %745 = vdwg.mxu0
    %v746 = vadd.f32 %v612, %v741
    %v747 = vadd.f32 %v615, %v744
    %748 = vrot.lane.b32.xlu0 %v350, 104
    %v749 = vpop.permute.xlu0 %748
    %750 = vrot.lane.b32.xlu0 %v353, 104
    %v751 = vpop.permute.xlu0 %750
    %752 = vrot.lane.b32.xlu0 %v350, 72
    %v753 = vpop.permute.xlu0 %752
    %754 = vrot.lane.b32.xlu0 %v353, 72
    %v755 = vpop.permute.xlu0 %754
    %v756 = vsel %vm365, %v749, 0
    %v758 = vsel %vm365, %v751, 0
    %v760 = vsel %vm365, %v753, 0
    %v762 = vsel %vm365, %v755, 0
    %764 = vmatpush.xpose.msra.mxu0 0.0
    %765 = vmatpush.xpose.msra.mxu0 0.0
    %766 = vmatpush.xpose.msra.mxu0 0.0
    %767 = vmatpush.xpose.msra.mxu0 0.0
    %768 = vmatpush.xpose.msra.mxu0 0.0
    %769 = vmatpush.xpose.msra.mxu0 0.0
    %770 = vmatpush.xpose.msra.mxu0 0.0
    %771 = vmatpush.xpose.msra.mxu0 0.0
    %772 = vmatpush.xpose.msra.mxu0 0.0
    %773 = vmatpush.xpose.msra.mxu0 0.0
    %774 = vmatpush.xpose.msra.mxu0 0.0
    %775 = vmatpush.xpose.msra.mxu0 0.0
    %776 = vmatpush.xpose.msra.mxu0 0.0
    %777 = vmatpush.xpose.msra.mxu0 0.0
    %778 = vmatpush.xpose.msra.mxu0 %v762
    %779 = vmatpush.xpose.msra.mxu0 %v760
    %780 = vmatmul.f32.gmra.mxu0 %v756
    %v781 = vpop.f32.mrf.mxu0
    %v782 = vadd.f32 0.0, %v781
    %783 = vmatmul.f32.gmra.mxu0 %v758
    %v784 = vpop.f32.mrf.mxu0
    %v785 = vadd.f32 0.0, %v784
    %786 = vdwg.mxu0
    %v787 = vmul.f32 %v782, 0.35355338
    %v788 = vmul.f32 %v785, 0.35355338
    %v789 = vadd.f32 %v787, %v315
    %v790 = vadd.f32 %v788, %v316
    %v791 = vsel %vm401, %v789, -inf
    %792 = vmax.xlane.f32.xlu0 %v791
    %v793 = vpop.xlane.xlu0 %792
    %v794 = vsel %vm401, %v790, -inf
    %795 = vmax.xlane.f32.xlu0 %v794
    %v796 = vpop.xlane.xlu0 %795
    %v797 = vsub.f32 %v789, %v793
    %v798 = vsub.f32 %v790, %v796
    %v799 = vmul.f32 %v797, 1.442695
    %v800 = vpow.pop %v799
    %v801 = vmul.f32 %v798, 1.442695
    %v802 = vpow.pop %v801
    %v803 = vsel %vm401, %v800, 0.0
    %804 = vadd.xlane.f32.xlu0 %v803
    %v805 = vpop.xlane.xlu0 %804
    %v806 = vsel %vm401, %v802, 0.0
    %807 = vadd.xlane.f32.xlu0 %v806
    %v808 = vpop.xlane.xlu0 %807
    %v809 = vrcp.pop %v805
    %v810 = vrcp.pop %v808
    %v811 = vmul.f32 %v800, %v809
    %v812 = vmul.f32 %v802, %v810
    %813 = vrot.lane.b32.xlu0 %v350, 40
    %v814 = vpop.permute.xlu0 %813
    %815 = vrot.lane.b32.xlu0 %v353, 40
    %v816 = vpop.permute.xlu0 %815
    %v820 = vsel %vm401, %v811, 0
    %v823 = vsel %vm401, %v812, 0
    %825 = vmatpush.msra.mxu0 0.0
    %826 = vmatpush.msra.mxu0 0.0
    %827 = vmatpush.msra.mxu0 0.0
    %828 = vmatpush.msra.mxu0 0.0
    %829 = vmatpush.msra.mxu0 0.0
    %830 = vmatpush.msra.mxu0 0.0
    %831 = vmatpush.msra.mxu0 0.0
    %832 = vmatpush.msra.mxu0 0.0
    %833 = vmatpush.msra.mxu0 0.0
    %834 = vmatpush.msra.mxu0 0.0
    %835 = vmatpush.msra.mxu0 0.0
    %836 = vmatpush.msra.mxu0 0.0
    %837 = vmatpush.msra.mxu0 0.0
    %838 = vmatpush.msra.mxu0 0.0
    %839 = vmatpush.msra.mxu0 %v816
    %840 = vmatpush.msra.mxu0 %v814
    %841 = vmatmul.f32.gmra.mxu0 %v820
    %v842 = vpop.f32.mrf.mxu0
    %v843 = vadd.f32 0.0, %v842
    %844 = vmatmul.f32.gmra.mxu0 %v823
    %v845 = vpop.f32.mrf.mxu0
    %v846 = vadd.f32 0.0, %v845
    %847 = vdwg.mxu0
    %v849 = vsel %vm365, %v843, 0
    %v852 = vsel %vm365, %v846, 0
    %854 = vmatpush.msra.mxu0 0.0
    %855 = vmatpush.msra.mxu0 0.0
    %856 = vmatpush.msra.mxu0 0.0
    %857 = vmatpush.msra.mxu0 0.0
    %858 = vmatpush.msra.mxu0 0.0
    %859 = vmatpush.msra.mxu0 0.0
    %860 = vmatpush.msra.mxu0 0.0
    %861 = vmatpush.msra.mxu0 0.0
    %862 = vmatpush.msra.mxu0 0.0
    %863 = vmatpush.msra.mxu0 0.0
    %864 = vmatpush.msra.mxu0 0.0
    %865 = vmatpush.msra.mxu0 0.0
    %866 = vmatpush.msra.mxu0 0.0
    %867 = vmatpush.msra.mxu0 0.0
    %868 = vmatpush.msra.mxu0 0.0
    %869 = vmatpush.msra.mxu0 %v358
    %870 = vmatmul.f32.gmra.mxu0 %v849
    %v871 = vpop.f32.mrf.mxu0
    %v872 = vadd.f32 0.0, %v871
    %873 = vmatmul.f32.gmra.mxu0 %v852
    %v874 = vpop.f32.mrf.mxu0
    %v875 = vadd.f32 0.0, %v874
    %876 = vdwg.mxu0
    %v877 = vadd.f32 %v746, %v872
    %v878 = vadd.f32 %v747, %v875
    %v879 = vld [vmem:[#allocation8] sm:$0x1]
    %v881 = vperm.slane %v879, 0
    %v883 = vadd.f32 %v877, %v881
    %v884 = vadd.f32 %v878, %v881
    %v885 = vadd.f32 %v286, %v883
    %v886 = vadd.f32 %v289, %v884
    %v887 = vsel %vm325, %v885, 0.0
    %888 = vadd.xlane.f32.xlu0 %v887
    %v889 = vpop.xlane.xlu0 %888
    %v890 = vsel %vm325, %v886, 0.0
    %891 = vadd.xlane.f32.xlu0 %v890
    %v892 = vpop.xlane.xlu0 %891
    %v893 = vrcp.pop 32.0
    %v894 = vmul.f32 32.0, %v893
    %v895 = vsub.f32 1.0, %v894
    %v896 = vmul.f32 %v893, %v895
    %v897 = vadd.f32 %v893, %v896
    %vm898 = vweird.f32 %v893
    %v899 = vsel %vm898, %v893, %v897
    %v900 = vmul.f32 %v889, %v899
    %v901 = vmul.f32 %v892, %v899
    %v902 = vsub.f32 %v885, %v900
    %v903 = vsub.f32 %v886, %v901
    %v904 = vmul.f32 %v902, %v902
    %v905 = vmul.f32 %v903, %v903
    %v906 = vsel %vm325, %v904, 0.0
    %907 = vadd.xlane.f32.xlu0 %v906
    %v908 = vpop.xlane.xlu0 %907
    %v909 = vsel %vm325, %v905, 0.0
    %910 = vadd.xlane.f32.xlu0 %v909
    %v911 = vpop.xlane.xlu0 %910
    %v912 = vmul.f32 %v908, %v899
    %v913 = vmul.f32 %v911, %v899
    %v914 = vadd.f32 %v912, 1e-05
    %v915 = vadd.f32 %v913, 1e-05
    %v916 = vrsqrt.pop %v914
    %v917 = vmul.f32 %v916, %v914
    %v918 = vmul.f32 %v917, %v916
    %v919 = vmul.f32 0.5, %v918
    %v920 = vsub.f32 1.5, %v919
    %v921 = vmul.f32 %v916, %v920
    %vm922 = vweird.f32 %v914
    %vm923 = vweird.f32 %v916
    %vm924 = vmor %vm922, %vm923
    %v925 = vsel %vm924, %v916, %v921
    %v926 = vrsqrt.pop %v915
    %v927 = vmul.f32 %v926, %v915
    %v928 = vmul.f32 %v927, %v926
    %v929 = vmul.f32 0.5, %v928
    %v930 = vsub.f32 1.5, %v929
    %v931 = vmul.f32 %v926, %v930
    %vm932 = vweird.f32 %v915
    %vm933 = vweird.f32 %v926
    %vm934 = vmor %vm932, %vm933
    %v935 = vsel %vm934, %v926, %v931
    %v936 = vmul.f32 %v902, %v925
    %v937 = vmul.f32 %v903, %v935
    %v938 = vld [vmem:[#allocation10] sm:$0x1]
    %v940 = vperm.slane %v938, 0
    %v942 = vmul.f32 %v936, %v940
    %v943 = vmul.f32 %v937, %v940
    %v944 = vld [vmem:[#allocation11] sm:$0x1]
    %v946 = vperm.slane %v944, 0
    %v948 = vadd.f32 %v942, %v946
    %v949 = vadd.f32 %v943, %v946
    %v950 = vld [vmem:[%s11] sm:$0xff]
    %v951 = vld [vmem:[%s11 + $0x8] sm:$0xff]
    %v952 = vld [vmem:[%s11 + $0x10] sm:$0xff]
    %v953 = vld [vmem:[%s11 + $0x18] sm:$0xff]
    %v954 = vld [vmem:[#allocation13] sm:$0x1]
    %v956 = vperm.slane %v954, 0
    %v959 = vsel %vm325, %v948, 0
    %v962 = vsel %vm325, %v949, 0
    %964 = vmatpush.msra.mxu0 0.0
    %965 = vmatpush.msra.mxu0 0.0
    %966 = vmatpush.msra.mxu0 0.0
    %967 = vmatpush.msra.mxu0 0.0
    %968 = vmatpush.msra.mxu0 0.0
    %969 = vmatpush.msra.mxu0 0.0
    %970 = vmatpush.msra.mxu0 0.0
    %971 = vmatpush.msra.mxu0 0.0
    %972 = vmatpush.msra.mxu0 0.0
    %973 = vmatpush.msra.mxu0 0.0
    %974 = vmatpush.msra.mxu0 0.0
    %975 = vmatpush.msra.mxu0 0.0
    %976 = vmatpush.msra.mxu0 %v953
    %977 = vmatpush.msra.mxu0 %v952
    %978 = vmatpush.msra.mxu0 %v951
    %979 = vmatpush.msra.mxu0 %v950
    %980 = vmatmul.f32.gmra.mxu0 %v959
    %v981 = vpop.f32.mrf.mxu0
    %v982 = vadd.f32 %v956, %v981
    %983 = vmatmul.f32.gmra.mxu0 %v962
    %v984 = vpop.f32.mrf.mxu0
    %v985 = vadd.f32 %v956, %v984
    %986 = vdwg.mxu0
    %v987 = vmax.f32 %v982, 0.0
    %v988 = vmax.f32 %v985, 0.0
    %v989 = vld [vmem:[%s13] sm:$0xff]
    %v990 = vld [vmem:[%s13 + $0x8] sm:$0xff]
    %v991 = vld [vmem:[%s13 + $0x10] sm:$0xff]
    %v992 = vld [vmem:[%s13 + $0x18] sm:$0xff]
    %v993 = vld [vmem:[%s13 + $0x20] sm:$0xff]
    %v994 = vld [vmem:[%s13 + $0x28] sm:$0xff]
    %v995 = vld [vmem:[%s13 + $0x30] sm:$0xff]
    %v996 = vld [vmem:[%s13 + $0x38] sm:$0xff]
    %v997 = vld [vmem:[#allocation14] sm:$0x1]
    %v999 = vperm.slane %v997, 0
    %v1002 = vsel %vm261, %v987, 0
    %v1005 = vsel %vm261, %v988, 0
    %1007 = vmatpush.msra.mxu0 0.0
    %1008 = vmatpush.msra.mxu0 0.0
    %1009 = vmatpush.msra.mxu0 0.0
    %1010 = vmatpush.msra.mxu0 0.0
    %1011 = vmatpush.msra.mxu0 0.0
    %1012 = vmatpush.msra.mxu0 0.0
    %1013 = vmatpush.msra.mxu0 0.0
    %1014 = vmatpush.msra.mxu0 0.0
    %1015 = vmatpush.msra.mxu0 %v996
    %1016 = vmatpush.msra.mxu0 %v995
    %1017 = vmatpush.msra.mxu0 %v994
    %1018 = vmatpush.msra.mxu0 %v993
    %1019 = vmatpush.msra.mxu0 %v992
    %1020 = vmatpush.msra.mxu0 %v991
    %1021 = vmatpush.msra.mxu0 %v990
    %1022 = vmatpush.msra.mxu0 %v989
    %1023 = vmatmul.f32.gmra.mxu0 %v1002
    %v1024 = vpop.f32.mrf.mxu0
    %v1025 = vadd.f32 %v999, %v1024
    %1026 = vmatmul.f32.gmra.mxu0 %v1005
    %v1027 = vpop.f32.mrf.mxu0
    %v1028 = vadd.f32 %v999, %v1027
    %1029 = vdwg.mxu0
    %v1030 = vadd.f32 %v948, %v1025
    %v1031 = vadd.f32 %v949, %v1028
    %v1032 = vsel %vm325, %v1030, 0.0
    %1033 = vadd.xlane.f32.xlu0 %v1032
    %v1034 = vpop.xlane.xlu0 %1033
    %v1035 = vsel %vm325, %v1031, 0.0
    %1036 = vadd.xlane.f32.xlu0 %v1035
    %v1037 = vpop.xlane.xlu0 %1036
    %v1038 = vmul.f32 %v1034, %v899
    %v1039 = vmul.f32 %v1037, %v899
    %v1040 = vsub.f32 %v1030, %v1038
    %v1041 = vsub.f32 %v1031, %v1039
    %v1042 = vmul.f32 %v1040, %v1040
    %v1043 = vmul.f32 %v1041, %v1041
    %v1044 = vsel %vm325, %v1042, 0.0
    %1045 = vadd.xlane.f32.xlu0 %v1044
    %v1046 = vpop.xlane.xlu0 %1045
    %v1047 = vsel %vm325, %v1043, 0.0
    %1048 = vadd.xlane.f32.xlu0 %v1047
    %v1049 = vpop.xlane.xlu0 %1048
    %v1050 = vmul.f32 %v1046, %v899
    %v1051 = vmul.f32 %v1049, %v899
    %v1052 = vadd.f32 %v1050, 1e-05
    %v1053 = vadd.f32 %v1051, 1e-05
    %v1054 = vrsqrt.pop %v1052
    %v1055 = vmul.f32 %v1054, %v1052
    %v1056 = vmul.f32 %v1055, %v1054
    %v1057 = vmul.f32 0.5, %v1056
    %v1058 = vsub.f32 1.5, %v1057
    %v1059 = vmul.f32 %v1054, %v1058
    %vm1060 = vweird.f32 %v1052
    %vm1061 = vweird.f32 %v1054
    %vm1062 = vmor %vm1060, %vm1061
    %v1063 = vsel %vm1062, %v1054, %v1059
    %v1064 = vrsqrt.pop %v1053
    %v1065 = vmul.f32 %v1064, %v1053
    %v1066 = vmul.f32 %v1065, %v1064
    %v1067 = vmul.f32 0.5, %v1066
    %v1068 = vsub.f32 1.5, %v1067
    %v1069 = vmul.f32 %v1064, %v1068
    %vm1070 = vweird.f32 %v1053
    %vm1071 = vweird.f32 %v1064
    %vm1072 = vmor %vm1070, %vm1071
    %v1073 = vsel %vm1072, %v1064, %v1069
    %v1074 = vmul.f32 %v1040, %v1063
    %v1075 = vmul.f32 %v1041, %v1073
    %v1076 = vld [vmem:[#allocation16] sm:$0x1]
    %v1078 = vperm.slane %v1076, 0
    %v1080 = vmul.f32 %v1074, %v1078
    %v1081 = vmul.f32 %v1075, %v1078
    %v1082 = vld [vmem:[#allocation17] sm:$0x1]
    %v1084 = vperm.slane %v1082, 0
    %v1086 = vadd.f32 %v1080, %v1084
    %v1087 = vadd.f32 %v1081, %v1084
    %s1088 = scalar_lea.vmem %s5, 32
    %v1089 = vld [vmem:[%s1088] sm:$0xff]
    %v1090 = vld [vmem:[%s1088 + $0x8] sm:$0xff]
    %v1091 = vld [vmem:[%s1088 + $0x10] sm:$0xff]
    %v1092 = vld [vmem:[%s1088 + $0x18] sm:$0xff]
    %s1093 = scalar_lea.vmem [#allocation7], 1
    %v1094 = vld [vmem:[%s1093] sm:$0x1]
    %v1096 = vperm.slane %v1094, 0
    %v1099 = vsel %vm325, %v1086, 0
    %v1102 = vsel %vm325, %v1087, 0
    %1104 = vmatpush.msra.mxu0 0.0
    %1105 = vmatpush.msra.mxu0 0.0
    %1106 = vmatpush.msra.mxu0 0.0
    %1107 = vmatpush.msra.mxu0 0.0
    %1108 = vmatpush.msra.mxu0 0.0
    %1109 = vmatpush.msra.mxu0 0.0
    %1110 = vmatpush.msra.mxu0 0.0
    %1111 = vmatpush.msra.mxu0 0.0
    %1112 = vmatpush.msra.mxu0 0.0
    %1113 = vmatpush.msra.mxu0 0.0
    %1114 = vmatpush.msra.mxu0 0.0
    %1115 = vmatpush.msra.mxu0 0.0
    %1116 = vmatpush.msra.mxu0 %v1092
    %1117 = vmatpush.msra.mxu0 %v1091
    %1118 = vmatpush.msra.mxu0 %v1090
    %1119 = vmatpush.msra.mxu0 %v1089
    %1120 = vmatmul.f32.gmra.mxu0 %v1099
    %v1121 = vpop.f32.mrf.mxu0
    %v1122 = vadd.f32 %v1096, %v1121
    %1123 = vmatmul.f32.gmra.mxu0 %v1102
    %v1124 = vpop.f32.mrf.mxu0
    %v1125 = vadd.f32 %v1096, %v1124
    %1126 = vdwg.mxu0
    %s1127 = scalar_lea.vmem %s7, 32
    %v1128 = vld [vmem:[%s1127] sm:$0xff]
    %v1129 = vld [vmem:[%s1127 + $0x8] sm:$0xff]
    %v1130 = vld [vmem:[%s1127 + $0x10] sm:$0xff]
    %v1131 = vld [vmem:[%s1127 + $0x18] sm:$0xff]
    %1134 = vrot.lane.b32.xlu0 %v1122, 96
    %v1135 = vpop.permute.xlu0 %1134
    %1136 = vrot.lane.b32.xlu0 %v1125, 96
    %v1137 = vpop.permute.xlu0 %1136
    %v1138 = vsel %vm365, %v1122, 0
    %v1140 = vsel %vm365, %v1125, 0
    %v1142 = vsel %vm365, %v1135, 0
    %v1144 = vsel %vm365, %v1137, 0
    %1146 = vmatpush.xpose.msra.mxu0 0.0
    %1147 = vmatpush.xpose.msra.mxu0 0.0
    %1148 = vmatpush.xpose.msra.mxu0 0.0
    %1149 = vmatpush.xpose.msra.mxu0 0.0
    %1150 = vmatpush.xpose.msra.mxu0 0.0
    %1151 = vmatpush.xpose.msra.mxu0 0.0
    %1152 = vmatpush.xpose.msra.mxu0 0.0
    %1153 = vmatpush.xpose.msra.mxu0 0.0
    %1154 = vmatpush.xpose.msra.mxu0 0.0
    %1155 = vmatpush.xpose.msra.mxu0 0.0
    %1156 = vmatpush.xpose.msra.mxu0 0.0
    %1157 = vmatpush.xpose.msra.mxu0 0.0
    %1158 = vmatpush.xpose.msra.mxu0 0.0
    %1159 = vmatpush.xpose.msra.mxu0 0.0
    %1160 = vmatpush.xpose.msra.mxu0 %v1144
    %1161 = vmatpush.xpose.msra.mxu0 %v1142
    %1162 = vmatmul.f32.gmra.mxu0 %v1138
    %v1163 = vpop.f32.mrf.mxu0
    %v1164 = vadd.f32 0.0, %v1163
    %1165 = vmatmul.f32.gmra.mxu0 %v1140
    %v1166 = vpop.f32.mrf.mxu0
    %v1167 = vadd.f32 0.0, %v1166
    %1168 = vdwg.mxu0
    %v1169 = vmul.f32 %v1164, 0.35355338
    %v1170 = vmul.f32 %v1167, 0.35355338
    %v1171 = vadd.f32 %v1169, %v315
    %v1172 = vadd.f32 %v1170, %v316
    %v1173 = vsel %vm401, %v1171, -inf
    %1174 = vmax.xlane.f32.xlu0 %v1173
    %v1175 = vpop.xlane.xlu0 %1174
    %v1176 = vsel %vm401, %v1172, -inf
    %1177 = vmax.xlane.f32.xlu0 %v1176
    %v1178 = vpop.xlane.xlu0 %1177
    %v1179 = vsub.f32 %v1171, %v1175
    %v1180 = vsub.f32 %v1172, %v1178
    %v1181 = vmul.f32 %v1179, 1.442695
    %v1182 = vpow.pop %v1181
    %v1183 = vmul.f32 %v1180, 1.442695
    %v1184 = vpow.pop %v1183
    %v1185 = vsel %vm401, %v1182, 0.0
    %1186 = vadd.xlane.f32.xlu0 %v1185
    %v1187 = vpop.xlane.xlu0 %1186
    %v1188 = vsel %vm401, %v1184, 0.0
    %1189 = vadd.xlane.f32.xlu0 %v1188
    %v1190 = vpop.xlane.xlu0 %1189
    %v1191 = vrcp.pop %v1187
    %v1192 = vrcp.pop %v1190
    %v1193 = vmul.f32 %v1182, %v1191
    %v1194 = vmul.f32 %v1184, %v1192
    %1195 = vrot.lane.b32.xlu0 %v1122, 64
    %v1196 = vpop.permute.xlu0 %1195
    %1197 = vrot.lane.b32.xlu0 %v1125, 64
    %v1198 = vpop.permute.xlu0 %1197
    %v1202 = vsel %vm401, %v1193, 0
    %v1205 = vsel %vm401, %v1194, 0
    %1207 = vmatpush.msra.mxu0 0.0
    %1208 = vmatpush.msra.mxu0 0.0
    %1209 = vmatpush.msra.mxu0 0.0
    %1210 = vmatpush.msra.mxu0 0.0
    %1211 = vmatpush.msra.mxu0 0.0
    %1212 = vmatpush.msra.mxu0 0.0
    %1213 = vmatpush.msra.mxu0 0.0
    %1214 = vmatpush.msra.mxu0 0.0
    %1215 = vmatpush.msra.mxu0 0.0
    %1216 = vmatpush.msra.mxu0 0.0
    %1217 = vmatpush.msra.mxu0 0.0
    %1218 = vmatpush.msra.mxu0 0.0
    %1219 = vmatpush.msra.mxu0 0.0
    %1220 = vmatpush.msra.mxu0 0.0
    %1221 = vmatpush.msra.mxu0 %v1198
    %1222 = vmatpush.msra.mxu0 %v1196
    %1223 = vmatmul.f32.gmra.mxu0 %v1202
    %v1224 = vpop.f32.mrf.mxu0
    %v1225 = vadd.f32 0.0, %v1224
    %1226 = vmatmul.f32.gmra.mxu0 %v1205
    %v1227 = vpop.f32.mrf.mxu0
    %v1228 = vadd.f32 0.0, %v1227
    %1229 = vdwg.mxu0
    %1230 = vrot.lane.b32.xlu0 %v1122, 120
    %v1231 = vpop.permute.xlu0 %1230
    %1232 = vrot.lane.b32.xlu0 %v1125, 120
    %v1233 = vpop.permute.xlu0 %1232
    %1234 = vrot.lane.b32.xlu0 %v1122, 88
    %v1235 = vpop.permute.xlu0 %1234
    %1236 = vrot.lane.b32.xlu0 %v1125, 88
    %v1237 = vpop.permute.xlu0 %1236
    %v1238 = vsel %vm365, %v1231, 0
    %v1240 = vsel %vm365, %v1233, 0
    %v1242 = vsel %vm365, %v1235, 0
    %v1244 = vsel %vm365, %v1237, 0
    %1246 = vmatpush.xpose.msra.mxu0 0.0
    %1247 = vmatpush.xpose.msra.mxu0 0.0
    %1248 = vmatpush.xpose.msra.mxu0 0.0
    %1249 = vmatpush.xpose.msra.mxu0 0.0
    %1250 = vmatpush.xpose.msra.mxu0 0.0
    %1251 = vmatpush.xpose.msra.mxu0 0.0
    %1252 = vmatpush.xpose.msra.mxu0 0.0
    %1253 = vmatpush.xpose.msra.mxu0 0.0
    %1254 = vmatpush.xpose.msra.mxu0 0.0
    %1255 = vmatpush.xpose.msra.mxu0 0.0
    %1256 = vmatpush.xpose.msra.mxu0 0.0
    %1257 = vmatpush.xpose.msra.mxu0 0.0
    %1258 = vmatpush.xpose.msra.mxu0 0.0
    %1259 = vmatpush.xpose.msra.mxu0 0.0
    %1260 = vmatpush.xpose.msra.mxu0 %v1244
    %1261 = vmatpush.xpose.msra.mxu0 %v1242
    %1262 = vmatmul.f32.gmra.mxu0 %v1238
    %v1263 = vpop.f32.mrf.mxu0
    %v1264 = vadd.f32 0.0, %v1263
    %1265 = vmatmul.f32.gmra.mxu0 %v1240
    %v1266 = vpop.f32.mrf.mxu0
    %v1267 = vadd.f32 0.0, %v1266
    %1268 = vdwg.mxu0
    %v1269 = vmul.f32 %v1264, 0.35355338
    %v1270 = vmul.f32 %v1267, 0.35355338
    %v1271 = vadd.f32 %v1269, %v315
    %v1272 = vadd.f32 %v1270, %v316
    %v1273 = vsel %vm401, %v1271, -inf
    %1274 = vmax.xlane.f32.xlu0 %v1273
    %v1275 = vpop.xlane.xlu0 %1274
    %v1276 = vsel %vm401, %v1272, -inf
    %1277 = vmax.xlane.f32.xlu0 %v1276
    %v1278 = vpop.xlane.xlu0 %1277
    %v1279 = vsub.f32 %v1271, %v1275
    %v1280 = vsub.f32 %v1272, %v1278
    %v1281 = vmul.f32 %v1279, 1.442695
    %v1282 = vpow.pop %v1281
    %v1283 = vmul.f32 %v1280, 1.442695
    %v1284 = vpow.pop %v1283
    %v1285 = vsel %vm401, %v1282, 0.0
    %1286 = vadd.xlane.f32.xlu0 %v1285
    %v1287 = vpop.xlane.xlu0 %1286
    %v1288 = vsel %vm401, %v1284, 0.0
    %1289 = vadd.xlane.f32.xlu0 %v1288
    %v1290 = vpop.xlane.xlu0 %1289
    %v1291 = vrcp.pop %v1287
    %v1292 = vrcp.pop %v1290
    %v1293 = vmul.f32 %v1282, %v1291
    %v1294 = vmul.f32 %v1284, %v1292
    %1295 = vrot.lane.b32.xlu0 %v1122, 56
    %v1296 = vpop.permute.xlu0 %1295
    %1297 = vrot.lane.b32.xlu0 %v1125, 56
    %v1298 = vpop.permute.xlu0 %1297
    %v1302 = vsel %vm401, %v1293, 0
    %v1305 = vsel %vm401, %v1294, 0
    %1307 = vmatpush.msra.mxu0 0.0
    %1308 = vmatpush.msra.mxu0 0.0
    %1309 = vmatpush.msra.mxu0 0.0
    %1310 = vmatpush.msra.mxu0 0.0
    %1311 = vmatpush.msra.mxu0 0.0
    %1312 = vmatpush.msra.mxu0 0.0
    %1313 = vmatpush.msra.mxu0 0.0
    %1314 = vmatpush.msra.mxu0 0.0
    %1315 = vmatpush.msra.mxu0 0.0
    %1316 = vmatpush.msra.mxu0 0.0
    %1317 = vmatpush.msra.mxu0 0.0
    %1318 = vmatpush.msra.mxu0 0.0
    %1319 = vmatpush.msra.mxu0 0.0
    %1320 = vmatpush.msra.mxu0 0.0
    %1321 = vmatpush.msra.mxu0 %v1298
    %1322 = vmatpush.msra.mxu0 %v1296
    %1323 = vmatmul.f32.gmra.mxu0 %v1302
    %v1324 = vpop.f32.mrf.mxu0
    %v1325 = vadd.f32 0.0, %v1324
    %1326 = vmatmul.f32.gmra.mxu0 %v1305
    %v1327 = vpop.f32.mrf.mxu0
    %v1328 = vadd.f32 0.0, %v1327
    %1329 = vdwg.mxu0
    %v1331 = vsel %vm365, %v1325, 0
    %v1334 = vsel %vm365, %v1328, 0
    %1336 = vmatpush.msra.mxu0 0.0
    %1337 = vmatpush.msra.mxu0 0.0
    %1338 = vmatpush.msra.mxu0 0.0
    %1339 = vmatpush.msra.mxu0 0.0
    %1340 = vmatpush.msra.mxu0 0.0
    %1341 = vmatpush.msra.mxu0 0.0
    %1342 = vmatpush.msra.mxu0 0.0
    %1343 = vmatpush.msra.mxu0 0.0
    %1344 = vmatpush.msra.mxu0 0.0
    %1345 = vmatpush.msra.mxu0 0.0
    %1346 = vmatpush.msra.mxu0 0.0
    %1347 = vmatpush.msra.mxu0 0.0
    %1348 = vmatpush.msra.mxu0 0.0
    %1349 = vmatpush.msra.mxu0 0.0
    %1350 = vmatpush.msra.mxu0 0.0
    %1351 = vmatpush.msra.mxu0 %v1129
    %1352 = vmatmul.f32.gmra.mxu0 %v1331
    %v1353 = vpop.f32.mrf.mxu0
    %v1354 = vadd.f32 0.0, %v1353
    %1355 = vmatmul.f32.gmra.mxu0 %v1334
    %v1356 = vpop.f32.mrf.mxu0
    %v1357 = vadd.f32 0.0, %v1356
    %1358 = vdwg.mxu0
    %v1360 = vsel %vm365, %v1225, 0
    %v1363 = vsel %vm365, %v1228, 0
    %1365 = vmatpush.msra.mxu0 0.0
    %1366 = vmatpush.msra.mxu0 0.0
    %1367 = vmatpush.msra.mxu0 0.0
    %1368 = vmatpush.msra.mxu0 0.0
    %1369 = vmatpush.msra.mxu0 0.0
    %1370 = vmatpush.msra.mxu0 0.0
    %1371 = vmatpush.msra.mxu0 0.0
    %1372 = vmatpush.msra.mxu0 0.0
    %1373 = vmatpush.msra.mxu0 0.0
    %1374 = vmatpush.msra.mxu0 0.0
    %1375 = vmatpush.msra.mxu0 0.0
    %1376 = vmatpush.msra.mxu0 0.0
    %1377 = vmatpush.msra.mxu0 0.0
    %1378 = vmatpush.msra.mxu0 0.0
    %1379 = vmatpush.msra.mxu0 0.0
    %1380 = vmatpush.msra.mxu0 %v1128
    %1381 = vmatmul.f32.gmra.mxu0 %v1360
    %v1382 = vpop.f32.mrf.mxu0
    %v1383 = vadd.f32 %v1354, %v1382
    %1384 = vmatmul.f32.gmra.mxu0 %v1363
    %v1385 = vpop.f32.mrf.mxu0
    %v1386 = vadd.f32 %v1357, %v1385
    %1387 = vdwg.mxu0
    %1388 = vrot.lane.b32.xlu0 %v1122, 112
    %v1389 = vpop.permute.xlu0 %1388
    %1390 = vrot.lane.b32.xlu0 %v1125, 112
    %v1391 = vpop.permute.xlu0 %1390
    %1392 = vrot.lane.b32.xlu0 %v1122, 80
    %v1393 = vpop.permute.xlu0 %1392
    %1394 = vrot.lane.b32.xlu0 %v1125, 80
    %v1395 = vpop.permute.xlu0 %1394
    %v1396 = vsel %vm365, %v1389, 0
    %v1398 = vsel %vm365, %v1391, 0
    %v1400 = vsel %vm365, %v1393, 0
    %v1402 = vsel %vm365, %v1395, 0
    %1404 = vmatpush.xpose.msra.mxu0 0.0
    %1405 = vmatpush.xpose.msra.mxu0 0.0
    %1406 = vmatpush.xpose.msra.mxu0 0.0
    %1407 = vmatpush.xpose.msra.mxu0 0.0
    %1408 = vmatpush.xpose.msra.mxu0 0.0
    %1409 = vmatpush.xpose.msra.mxu0 0.0
    %1410 = vmatpush.xpose.msra.mxu0 0.0
    %1411 = vmatpush.xpose.msra.mxu0 0.0
    %1412 = vmatpush.xpose.msra.mxu0 0.0
    %1413 = vmatpush.xpose.msra.mxu0 0.0
    %1414 = vmatpush.xpose.msra.mxu0 0.0
    %1415 = vmatpush.xpose.msra.mxu0 0.0
    %1416 = vmatpush.xpose.msra.mxu0 0.0
    %1417 = vmatpush.xpose.msra.mxu0 0.0
    %1418 = vmatpush.xpose.msra.mxu0 %v1402
    %1419 = vmatpush.xpose.msra.mxu0 %v1400
    %1420 = vmatmul.f32.gmra.mxu0 %v1396
    %v1421 = vpop.f32.mrf.mxu0
    %v1422 = vadd.f32 0.0, %v1421
    %1423 = vmatmul.f32.gmra.mxu0 %v1398
    %v1424 = vpop.f32.mrf.mxu0
    %v1425 = vadd.f32 0.0, %v1424
    %1426 = vdwg.mxu0
    %v1427 = vmul.f32 %v1422, 0.35355338
    %v1428 = vmul.f32 %v1425, 0.35355338
    %v1429 = vadd.f32 %v1427, %v315
    %v1430 = vadd.f32 %v1428, %v316
    %v1431 = vsel %vm401, %v1429, -inf
    %1432 = vmax.xlane.f32.xlu0 %v1431
    %v1433 = vpop.xlane.xlu0 %1432
    %v1434 = vsel %vm401, %v1430, -inf
    %1435 = vmax.xlane.f32.xlu0 %v1434
    %v1436 = vpop.xlane.xlu0 %1435
    %v1437 = vsub.f32 %v1429, %v1433
    %v1438 = vsub.f32 %v1430, %v1436
    %v1439 = vmul.f32 %v1437, 1.442695
    %v1440 = vpow.pop %v1439
    %v1441 = vmul.f32 %v1438, 1.442695
    %v1442 = vpow.pop %v1441
    %v1443 = vsel %vm401, %v1440, 0.0
    %1444 = vadd.xlane.f32.xlu0 %v1443
    %v1445 = vpop.xlane.xlu0 %1444
    %v1446 = vsel %vm401, %v1442, 0.0
    %1447 = vadd.xlane.f32.xlu0 %v1446
    %v1448 = vpop.xlane.xlu0 %1447
    %v1449 = vrcp.pop %v1445
    %v1450 = vrcp.pop %v1448
    %v1451 = vmul.f32 %v1440, %v1449
    %v1452 = vmul.f32 %v1442, %v1450
    %1453 = vrot.lane.b32.xlu0 %v1122, 48
    %v1454 = vpop.permute.xlu0 %1453
    %1455 = vrot.lane.b32.xlu0 %v1125, 48
    %v1456 = vpop.permute.xlu0 %1455
    %v1460 = vsel %vm401, %v1451, 0
    %v1463 = vsel %vm401, %v1452, 0
    %1465 = vmatpush.msra.mxu0 0.0
    %1466 = vmatpush.msra.mxu0 0.0
    %1467 = vmatpush.msra.mxu0 0.0
    %1468 = vmatpush.msra.mxu0 0.0
    %1469 = vmatpush.msra.mxu0 0.0
    %1470 = vmatpush.msra.mxu0 0.0
    %1471 = vmatpush.msra.mxu0 0.0
    %1472 = vmatpush.msra.mxu0 0.0
    %1473 = vmatpush.msra.mxu0 0.0
    %1474 = vmatpush.msra.mxu0 0.0
    %1475 = vmatpush.msra.mxu0 0.0
    %1476 = vmatpush.msra.mxu0 0.0
    %1477 = vmatpush.msra.mxu0 0.0
    %1478 = vmatpush.msra.mxu0 0.0
    %1479 = vmatpush.msra.mxu0 %v1456
    %1480 = vmatpush.msra.mxu0 %v1454
    %1481 = vmatmul.f32.gmra.mxu0 %v1460
    %v1482 = vpop.f32.mrf.mxu0
    %v1483 = vadd.f32 0.0, %v1482
    %1484 = vmatmul.f32.gmra.mxu0 %v1463
    %v1485 = vpop.f32.mrf.mxu0
    %v1486 = vadd.f32 0.0, %v1485
    %1487 = vdwg.mxu0
    %v1489 = vsel %vm365, %v1483, 0
    %v1492 = vsel %vm365, %v1486, 0
    %1494 = vmatpush.msra.mxu0 0.0
    %1495 = vmatpush.msra.mxu0 0.0
    %1496 = vmatpush.msra.mxu0 0.0
    %1497 = vmatpush.msra.mxu0 0.0
    %1498 = vmatpush.msra.mxu0 0.0
    %1499 = vmatpush.msra.mxu0 0.0
    %1500 = vmatpush.msra.mxu0 0.0
    %1501 = vmatpush.msra.mxu0 0.0
    %1502 = vmatpush.msra.mxu0 0.0
    %1503 = vmatpush.msra.mxu0 0.0
    %1504 = vmatpush.msra.mxu0 0.0
    %1505 = vmatpush.msra.mxu0 0.0
    %1506 = vmatpush.msra.mxu0 0.0
    %1507 = vmatpush.msra.mxu0 0.0
    %1508 = vmatpush.msra.mxu0 0.0
    %1509 = vmatpush.msra.mxu0 %v1130
    %1510 = vmatmul.f32.gmra.mxu0 %v1489
    %v1511 = vpop.f32.mrf.mxu0
    %v1512 = vadd.f32 0.0, %v1511
    %1513 = vmatmul.f32.gmra.mxu0 %v1492
    %v1514 = vpop.f32.mrf.mxu0
    %v1515 = vadd.f32 0.0, %v1514
    %1516 = vdwg.mxu0
    %v1517 = vadd.f32 %v1383, %v1512
    %v1518 = vadd.f32 %v1386, %v1515
    %1519 = vrot.lane.b32.xlu0 %v1122, 104
    %v1520 = vpop.permute.xlu0 %1519
    %1521 = vrot.lane.b32.xlu0 %v1125, 104
    %v1522 = vpop.permute.xlu0 %1521
    %1523 = vrot.lane.b32.xlu0 %v1122, 72
    %v1524 = vpop.permute.xlu0 %1523
    %1525 = vrot.lane.b32.xlu0 %v1125, 72
    %v1526 = vpop.permute.xlu0 %1525
    %v1527 = vsel %vm365, %v1520, 0
    %v1529 = vsel %vm365, %v1522, 0
    %v1531 = vsel %vm365, %v1524, 0
    %v1533 = vsel %vm365, %v1526, 0
    %1535 = vmatpush.xpose.msra.mxu0 0.0
    %1536 = vmatpush.xpose.msra.mxu0 0.0
    %1537 = vmatpush.xpose.msra.mxu0 0.0
    %1538 = vmatpush.xpose.msra.mxu0 0.0
    %1539 = vmatpush.xpose.msra.mxu0 0.0
    %1540 = vmatpush.xpose.msra.mxu0 0.0
    %1541 = vmatpush.xpose.msra.mxu0 0.0
    %1542 = vmatpush.xpose.msra.mxu0 0.0
    %1543 = vmatpush.xpose.msra.mxu0 0.0
    %1544 = vmatpush.xpose.msra.mxu0 0.0
    %1545 = vmatpush.xpose.msra.mxu0 0.0
    %1546 = vmatpush.xpose.msra.mxu0 0.0
    %1547 = vmatpush.xpose.msra.mxu0 0.0
    %1548 = vmatpush.xpose.msra.mxu0 0.0
    %1549 = vmatpush.xpose.msra.mxu0 %v1533
    %1550 = vmatpush.xpose.msra.mxu0 %v1531
    %1551 = vmatmul.f32.gmra.mxu0 %v1527
    %v1552 = vpop.f32.mrf.mxu0
    %v1553 = vadd.f32 0.0, %v1552
    %1554 = vmatmul.f32.gmra.mxu0 %v1529
    %v1555 = vpop.f32.mrf.mxu0
    %v1556 = vadd.f32 0.0, %v1555
    %1557 = vdwg.mxu0
    %v1558 = vmul.f32 %v1553, 0.35355338
    %v1559 = vmul.f32 %v1556, 0.35355338
    %v1560 = vadd.f32 %v1558, %v315
    %v1561 = vadd.f32 %v1559, %v316
    %v1562 = vsel %vm401, %v1560, -inf
    %1563 = vmax.xlane.f32.xlu0 %v1562
    %v1564 = vpop.xlane.xlu0 %1563
    %v1565 = vsel %vm401, %v1561, -inf
    %1566 = vmax.xlane.f32.xlu0 %v1565
    %v1567 = vpop.xlane.xlu0 %1566
    %v1568 = vsub.f32 %v1560, %v1564
    %v1569 = vsub.f32 %v1561, %v1567
    %v1570 = vmul.f32 %v1568, 1.442695
    %v1571 = vpow.pop %v1570
    %v1572 = vmul.f32 %v1569, 1.442695
    %v1573 = vpow.pop %v1572
    %v1574 = vsel %vm401, %v1571, 0.0
    %1575 = vadd.xlane.f32.xlu0 %v1574
    %v1576 = vpop.xlane.xlu0 %1575
    %v1577 = vsel %vm401, %v1573, 0.0
    %1578 = vadd.xlane.f32.xlu0 %v1577
    %v1579 = vpop.xlane.xlu0 %1578
    %v1580 = vrcp.pop %v1576
    %v1581 = vrcp.pop %v1579
    %v1582 = vmul.f32 %v1571, %v1580
    %v1583 = vmul.f32 %v1573, %v1581
    %1584 = vrot.lane.b32.xlu0 %v1122, 40
    %v1585 = vpop.permute.xlu0 %1584
    %1586 = vrot.lane.b32.xlu0 %v1125, 40
    %v1587 = vpop.permute.xlu0 %1586
    %v1591 = vsel %vm401, %v1582, 0
    %v1594 = vsel %vm401, %v1583, 0
    %1596 = vmatpush.msra.mxu0 0.0
    %1597 = vmatpush.msra.mxu0 0.0
    %1598 = vmatpush.msra.mxu0 0.0
    %1599 = vmatpush.msra.mxu0 0.0
    %1600 = vmatpush.msra.mxu0 0.0
    %1601 = vmatpush.msra.mxu0 0.0
    %1602 = vmatpush.msra.mxu0 0.0
    %1603 = vmatpush.msra.mxu0 0.0
    %1604 = vmatpush.msra.mxu0 0.0
    %1605 = vmatpush.msra.mxu0 0.0
    %1606 = vmatpush.msra.mxu0 0.0
    %1607 = vmatpush.msra.mxu0 0.0
    %1608 = vmatpush.msra.mxu0 0.0
    %1609 = vmatpush.msra.mxu0 0.0
    %1610 = vmatpush.msra.mxu0 %v1587
    %1611 = vmatpush.msra.mxu0 %v1585
    %1612 = vmatmul.f32.gmra.mxu0 %v1591
    %v1613 = vpop.f32.mrf.mxu0
    %v1614 = vadd.f32 0.0, %v1613
    %1615 = vmatmul.f32.gmra.mxu0 %v1594
    %v1616 = vpop.f32.mrf.mxu0
    %v1617 = vadd.f32 0.0, %v1616
    %1618 = vdwg.mxu0
    %v1620 = vsel %vm365, %v1614, 0
    %v1623 = vsel %vm365, %v1617, 0
    %1625 = vmatpush.msra.mxu0 0.0
    %1626 = vmatpush.msra.mxu0 0.0
    %1627 = vmatpush.msra.mxu0 0.0
    %1628 = vmatpush.msra.mxu0 0.0
    %1629 = vmatpush.msra.mxu0 0.0
    %1630 = vmatpush.msra.mxu0 0.0
    %1631 = vmatpush.msra.mxu0 0.0
    %1632 = vmatpush.msra.mxu0 0.0
    %1633 = vmatpush.msra.mxu0 0.0
    %1634 = vmatpush.msra.mxu0 0.0
    %1635 = vmatpush.msra.mxu0 0.0
    %1636 = vmatpush.msra.mxu0 0.0
    %1637 = vmatpush.msra.mxu0 0.0
    %1638 = vmatpush.msra.mxu0 0.0
    %1639 = vmatpush.msra.mxu0 0.0
    %1640 = vmatpush.msra.mxu0 %v1131
    %1641 = vmatmul.f32.gmra.mxu0 %v1620
    %v1642 = vpop.f32.mrf.mxu0
    %v1643 = vadd.f32 0.0, %v1642
    %1644 = vmatmul.f32.gmra.mxu0 %v1623
    %v1645 = vpop.f32.mrf.mxu0
    %v1646 = vadd.f32 0.0, %v1645
    %1647 = vdwg.mxu0
    %v1648 = vadd.f32 %v1517, %v1643
    %v1649 = vadd.f32 %v1518, %v1646
    %s1650 = scalar_lea.vmem [#allocation8], 1
    %v1651 = vld [vmem:[%s1650] sm:$0x1]
    %v1653 = vperm.slane %v1651, 0
    %v1655 = vadd.f32 %v1648, %v1653
    %v1656 = vadd.f32 %v1649, %v1653
    %v1657 = vadd.f32 %v1086, %v1655
    %v1658 = vadd.f32 %v1087, %v1656
    %v1659 = vsel %vm325, %v1657, 0.0
    %1660 = vadd.xlane.f32.xlu0 %v1659
    %v1661 = vpop.xlane.xlu0 %1660
    %v1662 = vsel %vm325, %v1658, 0.0
    %1663 = vadd.xlane.f32.xlu0 %v1662
    %v1664 = vpop.xlane.xlu0 %1663
    %v1665 = vmul.f32 %v1661, %v899
    %v1666 = vmul.f32 %v1664, %v899
    %v1667 = vsub.f32 %v1657, %v1665
    %v1668 = vsub.f32 %v1658, %v1666
    %v1669 = vmul.f32 %v1667, %v1667
    %v1670 = vmul.f32 %v1668, %v1668
    %v1671 = vsel %vm325, %v1669, 0.0
    %1672 = vadd.xlane.f32.xlu0 %v1671
    %v1673 = vpop.xlane.xlu0 %1672
    %v1674 = vsel %vm325, %v1670, 0.0
    %1675 = vadd.xlane.f32.xlu0 %v1674
    %v1676 = vpop.xlane.xlu0 %1675
    %v1677 = vmul.f32 %v1673, %v899
    %v1678 = vmul.f32 %v1676, %v899
    %v1679 = vadd.f32 %v1677, 1e-05
    %v1680 = vadd.f32 %v1678, 1e-05
    %v1681 = vrsqrt.pop %v1679
    %v1682 = vmul.f32 %v1681, %v1679
    %v1683 = vmul.f32 %v1682, %v1681
    %v1684 = vmul.f32 0.5, %v1683
    %v1685 = vsub.f32 1.5, %v1684
    %v1686 = vmul.f32 %v1681, %v1685
    %vm1687 = vweird.f32 %v1679
    %vm1688 = vweird.f32 %v1681
    %vm1689 = vmor %vm1687, %vm1688
    %v1690 = vsel %vm1689, %v1681, %v1686
    %v1691 = vrsqrt.pop %v1680
    %v1692 = vmul.f32 %v1691, %v1680
    %v1693 = vmul.f32 %v1692, %v1691
    %v1694 = vmul.f32 0.5, %v1693
    %v1695 = vsub.f32 1.5, %v1694
    %v1696 = vmul.f32 %v1691, %v1695
    %vm1697 = vweird.f32 %v1680
    %vm1698 = vweird.f32 %v1691
    %vm1699 = vmor %vm1697, %vm1698
    %v1700 = vsel %vm1699, %v1691, %v1696
    %v1701 = vmul.f32 %v1667, %v1690
    %v1702 = vmul.f32 %v1668, %v1700
    %s1703 = scalar_lea.vmem [#allocation10], 1
    %v1704 = vld [vmem:[%s1703] sm:$0x1]
    %v1706 = vperm.slane %v1704, 0
    %v1708 = vmul.f32 %v1701, %v1706
    %v1709 = vmul.f32 %v1702, %v1706
    %s1710 = scalar_lea.vmem [#allocation11], 1
    %v1711 = vld [vmem:[%s1710] sm:$0x1]
    %v1713 = vperm.slane %v1711, 0
    %v1715 = vadd.f32 %v1708, %v1713
    %v1716 = vadd.f32 %v1709, %v1713
    %s1717 = scalar_lea.vmem %s11, 32
    %v1718 = vld [vmem:[%s1717] sm:$0xff]
    %v1719 = vld [vmem:[%s1717 + $0x8] sm:$0xff]
    %v1720 = vld [vmem:[%s1717 + $0x10] sm:$0xff]
    %v1721 = vld [vmem:[%s1717 + $0x18] sm:$0xff]
    %s1722 = scalar_lea.vmem [#allocation13], 1
    %v1723 = vld [vmem:[%s1722] sm:$0x1]
    %v1725 = vperm.slane %v1723, 0
    %v1728 = vsel %vm325, %v1715, 0
    %v1731 = vsel %vm325, %v1716, 0
    %1733 = vmatpush.msra.mxu0 0.0
    %1734 = vmatpush.msra.mxu0 0.0
    %1735 = vmatpush.msra.mxu0 0.0
    %1736 = vmatpush.msra.mxu0 0.0
    %1737 = vmatpush.msra.mxu0 0.0
    %1738 = vmatpush.msra.mxu0 0.0
    %1739 = vmatpush.msra.mxu0 0.0
    %1740 = vmatpush.msra.mxu0 0.0
    %1741 = vmatpush.msra.mxu0 0.0
    %1742 = vmatpush.msra.mxu0 0.0
    %1743 = vmatpush.msra.mxu0 0.0
    %1744 = vmatpush.msra.mxu0 0.0
    %1745 = vmatpush.msra.mxu0 %v1721
    %1746 = vmatpush.msra.mxu0 %v1720
    %1747 = vmatpush.msra.mxu0 %v1719
    %1748 = vmatpush.msra.mxu0 %v1718
    %1749 = vmatmul.f32.gmra.mxu0 %v1728
    %v1750 = vpop.f32.mrf.mxu0
    %v1751 = vadd.f32 %v1725, %v1750
    %1752 = vmatmul.f32.gmra.mxu0 %v1731
    %v1753 = vpop.f32.mrf.mxu0
    %v1754 = vadd.f32 %v1725, %v1753
    %1755 = vdwg.mxu0
    %v1756 = vmax.f32 %v1751, 0.0
    %v1757 = vmax.f32 %v1754, 0.0
    %s1758 = scalar_lea.vmem %s13, 64
    %v1759 = vld [vmem:[%s1758] sm:$0xff]
    %v1760 = vld [vmem:[%s1758 + $0x8] sm:$0xff]
    %v1761 = vld [vmem:[%s1758 + $0x10] sm:$0xff]
    %v1762 = vld [vmem:[%s1758 + $0x18] sm:$0xff]
    %v1763 = vld [vmem:[%s1758 + $0x20] sm:$0xff]
    %v1764 = vld [vmem:[%s1758 + $0x28] sm:$0xff]
    %v1765 = vld [vmem:[%s1758 + $0x30] sm:$0xff]
    %v1766 = vld [vmem:[%s1758 + $0x38] sm:$0xff]
    %s1767 = scalar_lea.vmem [#allocation14], 1
    %v1768 = vld [vmem:[%s1767] sm:$0x1]
    %v1770 = vperm.slane %v1768, 0
    %v1773 = vsel %vm261, %v1756, 0
    %v1776 = vsel %vm261, %v1757, 0
    %1778 = vmatpush.msra.mxu0 0.0
    %1779 = vmatpush.msra.mxu0 0.0
    %1780 = vmatpush.msra.mxu0 0.0
    %1781 = vmatpush.msra.mxu0 0.0
    %1782 = vmatpush.msra.mxu0 0.0
    %1783 = vmatpush.msra.mxu0 0.0
    %1784 = vmatpush.msra.mxu0 0.0
    %1785 = vmatpush.msra.mxu0 0.0
    %1786 = vmatpush.msra.mxu0 %v1766
    %1787 = vmatpush.msra.mxu0 %v1765
    %1788 = vmatpush.msra.mxu0 %v1764
    %1789 = vmatpush.msra.mxu0 %v1763
    %1790 = vmatpush.msra.mxu0 %v1762
    %1791 = vmatpush.msra.mxu0 %v1761
    %1792 = vmatpush.msra.mxu0 %v1760
    %1793 = vmatpush.msra.mxu0 %v1759
    %1794 = vmatmul.f32.gmra.mxu0 %v1773
    %v1795 = vpop.f32.mrf.mxu0
    %v1796 = vadd.f32 %v1770, %v1795
    %1797 = vmatmul.f32.gmra.mxu0 %v1776
    %v1798 = vpop.f32.mrf.mxu0
    %v1799 = vadd.f32 %v1770, %v1798
    %1800 = vdwg.mxu0
    %v1801 = vadd.f32 %v1715, %v1796
    %v1802 = vadd.f32 %v1716, %v1799
    %v1803 = vsel %vm325, %v1801, 0.0
    %1804 = vadd.xlane.f32.xlu0 %v1803
    %v1805 = vpop.xlane.xlu0 %1804
    %v1806 = vsel %vm325, %v1802, 0.0
    %1807 = vadd.xlane.f32.xlu0 %v1806
    %v1808 = vpop.xlane.xlu0 %1807
    %v1809 = vmul.f32 %v1805, %v899
    %v1810 = vmul.f32 %v1808, %v899
    %v1811 = vsub.f32 %v1801, %v1809
    %v1812 = vsub.f32 %v1802, %v1810
    %v1813 = vmul.f32 %v1811, %v1811
    %v1814 = vmul.f32 %v1812, %v1812
    %v1815 = vsel %vm325, %v1813, 0.0
    %1816 = vadd.xlane.f32.xlu0 %v1815
    %v1817 = vpop.xlane.xlu0 %1816
    %v1818 = vsel %vm325, %v1814, 0.0
    %1819 = vadd.xlane.f32.xlu0 %v1818
    %v1820 = vpop.xlane.xlu0 %1819
    %v1821 = vmul.f32 %v1817, %v899
    %v1822 = vmul.f32 %v1820, %v899
    %v1823 = vadd.f32 %v1821, 1e-05
    %v1824 = vadd.f32 %v1822, 1e-05
    %v1825 = vrsqrt.pop %v1823
    %v1826 = vmul.f32 %v1825, %v1823
    %v1827 = vmul.f32 %v1826, %v1825
    %v1828 = vmul.f32 0.5, %v1827
    %v1829 = vsub.f32 1.5, %v1828
    %v1830 = vmul.f32 %v1825, %v1829
    %vm1831 = vweird.f32 %v1823
    %vm1832 = vweird.f32 %v1825
    %vm1833 = vmor %vm1831, %vm1832
    %v1834 = vsel %vm1833, %v1825, %v1830
    %v1835 = vrsqrt.pop %v1824
    %v1836 = vmul.f32 %v1835, %v1824
    %v1837 = vmul.f32 %v1836, %v1835
    %v1838 = vmul.f32 0.5, %v1837
    %v1839 = vsub.f32 1.5, %v1838
    %v1840 = vmul.f32 %v1835, %v1839
    %vm1841 = vweird.f32 %v1824
    %vm1842 = vweird.f32 %v1835
    %vm1843 = vmor %vm1841, %vm1842
    %v1844 = vsel %vm1843, %v1835, %v1840
    %v1845 = vmul.f32 %v1811, %v1834
    %v1846 = vmul.f32 %v1812, %v1844
    %s1847 = scalar_lea.vmem [#allocation16], 1
    %v1848 = vld [vmem:[%s1847] sm:$0x1]
    %v1850 = vperm.slane %v1848, 0
    %v1852 = vmul.f32 %v1845, %v1850
    %v1853 = vmul.f32 %v1846, %v1850
    %s1854 = scalar_lea.vmem [#allocation17], 1
    %v1855 = vld [vmem:[%s1854] sm:$0x1]
    %v1857 = vperm.slane %v1855, 0
    %v1859 = vadd.f32 %v1852, %v1857
    %v1860 = vadd.f32 %v1853, %v1857
    %v1861 = vld [vmem:[%s17] sm:$0xff]
    %v1862 = vld [vmem:[%s17 + $0x8] sm:$0xff]
    %v1863 = vld [vmem:[%s17 + $0x10] sm:$0xff]
    %v1864 = vld [vmem:[%s17 + $0x18] sm:$0xff]
    %v1865 = vld [vmem:[#allocation19] sm:$0x1]
    %v1867 = vperm.slane %v1865, 0
    %v1870 = vsel %vm325, %v1859, 0
    %v1873 = vsel %vm325, %v1860, 0
    %1875 = vmatpush.msra.mxu0 0.0
    %1876 = vmatpush.msra.mxu0 0.0
    %1877 = vmatpush.msra.mxu0 0.0
    %1878 = vmatpush.msra.mxu0 0.0
    %1879 = vmatpush.msra.mxu0 0.0
    %1880 = vmatpush.msra.mxu0 0.0
    %1881 = vmatpush.msra.mxu0 0.0
    %1882 = vmatpush.msra.mxu0 0.0
    %1883 = vmatpush.msra.mxu0 0.0
    %1884 = vmatpush.msra.mxu0 0.0
    %1885 = vmatpush.msra.mxu0 0.0
    %1886 = vmatpush.msra.mxu0 0.0
    %1887 = vmatpush.msra.mxu0 %v1864
    %1888 = vmatpush.msra.mxu0 %v1863
    %1889 = vmatpush.msra.mxu0 %v1862
    %1890 = vmatpush.msra.mxu0 %v1861
    %1891 = vmatmul.f32.gmra.mxu0 %v1870
    %v1892 = vpop.f32.mrf.mxu0
    %v1893 = vadd.f32 %v1867, %v1892
    %1894 = vmatmul.f32.gmra.mxu0 %v1873
    %v1895 = vpop.f32.mrf.mxu0
    %v1896 = vadd.f32 %v1867, %v1895
    %1897 = vdwg.mxu0
    %v1898 = vsel %vm261, %v1893, -inf
    %1899 = vmax.xlane.f32.xlu0 %v1898
    %v1900 = vpop.xlane.xlu0 %1899
    %v1901 = vsel %vm261, %v1896, -inf
    %1902 = vmax.xlane.f32.xlu0 %v1901
    %v1903 = vpop.xlane.xlu0 %1902
    %v1904 = vsub.f32 %v1893, %v1900
    %v1905 = vsub.f32 %v1896, %v1903
    %v1906 = vmul.f32 %v1904, 1.442695
    %v1907 = vpow.pop %v1906
    %v1908 = vmul.f32 %v1905, 1.442695
    %v1909 = vpow.pop %v1908
    %v1910 = vsel %vm261, %v1907, 0.0
    %1911 = vadd.xlane.f32.xlu0 %v1910
    %v1912 = vpop.xlane.xlu0 %1911
    %v1913 = vsel %vm261, %v1909, 0.0
    %1914 = vadd.xlane.f32.xlu0 %v1913
    %v1915 = vpop.xlane.xlu0 %1914
    %v1916 = vlog2.pop %v1912
    %v1917 = vmul.f32 %v1916, 0.6931472
    %v1918 = vlog2.pop %v1915
    %v1919 = vmul.f32 %v1918, 0.6931472
    %v1920 = vadd.f32 %v1917, %v1900
    %v1921 = vadd.f32 %v1919, %v1903
    %v1922 = vsub.f32 %v1893, %v1920
    %v1923 = vsub.f32 %v1896, %v1921
    %1924 = vst.msk [vmem:[#allocation20] sm:$0xff] %vm261, %v1922
    %1925 = vst.msk [vmem:[#allocation20 + $0x8] sm:$0xff] %vm261, %v1923
    // Predicated region
    $region122: #{_bert_forward.1} parent=1 // pred_check
      _
    $region123: #{_bert_forward.1} parent=1 // pred_check_branch
      %1927 = sbr.rel (0) target = $region125
    $region124: #{_bert_forward.1} parent=1 // pred_region
      %1929 = vsyncadd [#allocation4], 0
      %s1930 = sshll.u32 [#allocation20], 4
      %s1931 = int_to_ptr.vmem [resolvable:$true] %s1930
      %s1932 = sshll.u32 %s19, 4
      %s1933 = int_to_ptr.hbm [resolvable:$true] %s1932
      %1938 = dma.vmem_to_hbm [thread:$0]  %s1931, 256, %s1933, [#allocation4], 128, 128, 8
    $region125: #{_bert_forward.1} parent=1 // pred_fallthru
      _
    // Predicated region
    $region126: #{_bert_forward.1} parent=1 // pred_check
      _
    $region127: #{_bert_forward.1} parent=1 // pred_check_branch
      %1940 = sbr.rel (0) target = $region129
    $region128: #{_bert_forward.1} parent=1 // pred_region
      %1942 = dma.done [#allocation4], 256
    $region129: #{_bert_forward.1} parent=1 // pred_fallthru
      _
    %1943 = vsyncpa [#allocation3], 1
    %1944 = vsyncpa [#allocation6], 1
    %1945 = vsyncpa [#allocation9], 1
    %1946 = vsyncpa [#allocation12], 1
    %1947 = vsyncpa [#allocation15], 1
    %1948 = vsyncpa [#allocation18], 1
    %1949 = vsyncpa [#allocation4], 1

</llo_original>
